<compile_context>
chip_gen: v7x
topology: tpu7x:2x2x1
jax: 0.10.0
libtpu: 0.0.40
codegen_flags: <defaults>
</compile_context>

<pallas_src>
import jax
import jax.numpy as jnp
from jax import lax
from jax.experimental import pallas as pl
from jax.experimental.pallas import tpu as pltpu

LEAKY_SLOPE = 0.01  # nn.LeakyReLU() default


def _leaky(v):
    return jnp.where(v >= 0, v, LEAKY_SLOPE * v)


def _round_up(n, m):
    return ((n + m - 1) // m) * m


# ---------------------------------------------------------------------------
# Kernel factory: one batch element per grid step. lo_valid / l_orig static.
# ---------------------------------------------------------------------------
def _make_kernel(lo_valid, l_orig):
    inv_l = 1.0 / float(l_orig)

    def kernel(xe_ref, xo_ref,
               winc_ref, binc_ref,
               wf1_ref, bf1_ref, wf2_ref, bf2_ref,
               w2_ref, bc2_ref, wcv_ref, bcv_ref,
               o_ref,
               xeo_ref, col1_ref, xg_ref):
        Cp = xe_ref.shape[1]           # padded c1 (multiple of 16)
        Lo = xe_ref.shape[2]           # padded L // 2 (multiple of 128)
        G = 3 * Cp                     # padded concat width (3 groups)

        # Re-zero only the halo columns every step (cheap; safe under any
        # megacore grid split, unlike a program_id==0-gated one-time zero).
        zpad_x = jnp.zeros((2 * Cp, 2), jnp.bfloat16)
        xeo_ref[:, 0:2] = zpad_x
        xeo_ref[:, Lo + 2:Lo + 4] = zpad_x
        zpad_g = jnp.zeros((2 * G, 1), jnp.bfloat16)
        xg_ref[:, 0:1] = zpad_g
        xg_ref[:, Lo + 1:Lo + 2] = zpad_g

        xe = xe_ref[0]                 # (Cp, Lo) bf16, x at even positions
        xo = xo_ref[0]                 # (Cp, Lo) bf16, x at odd positions
        xeo_ref[0:Cp, 2:2 + Lo] = xe
        xeo_ref[Cp:2 * Cp, 2:2 + Lo] = xo

        # --- fused inception (conv k=5/7/9 + BN + LeakyReLU), both phases ---
        # im2col slabs = {even, odd} source x, phase-domain shifts {-2..2}.
        for src in range(2):
            for si in range(5):
                g = src * 5 + si
                col1_ref[g * Cp:(g + 1) * Cp, :] = (
                    xeo_ref[src * Cp:(src + 1) * Cp, si:si + Lo])

        y = jnp.dot(winc_ref[...], col1_ref[...],
                    preferred_element_type=jnp.float32)        # (2G, Lo) f32
        y = _leaky(y + binc_ref[...])

        # Zero the lane-padded columns: matches the original zero padding past
        # L and makes the SE global mean and conv_2 boundary taps exact.
        valid = lax.broadcasted_iota(jnp.int32, (1, Lo), 1) < lo_valid
        y = jnp.where(valid, y, 0.0)
        y_e = y[0:G, :]                # concat(x1,x2,x3), even positions
        y_o = y[G:2 * G, :]            # concat(x1,x2,x3), odd positions

        # --- ConvAttention (SE): avg pool -> 1x1 conv -> 1x1 conv -> sigmoid
        m = (jnp.sum(y_e, axis=1, keepdims=True) +
             jnp.sum(y_o, axis=1, keepdims=True)) * inv_l      # (G, 1)
        h = _leaky(jnp.dot(wf1_ref[...], m,
                           preferred_element_type=jnp.float32) + bf1_ref[...])
        gate = jax.nn.sigmoid(
            _leaky(jnp.dot(wf2_ref[...], h,
                           preferred_element_type=jnp.float32) + bf2_ref[...]))

        xg_ref[0:G, 1:1 + Lo] = (y_e * gate).astype(jnp.bfloat16)
        xg_ref[G:2 * G, 1:1 + Lo] = (y_o * gate).astype(jnp.bfloat16)

        # --- conv_2 (k=5, s=2, p=2) + BN + LeakyReLU: 5 tap-accumulated dots.
        # tap t reads xse[2j - 2 + t]:
        #   t=0 -> xg_e[j-1], t=1 -> xg_o[j-1], t=2 -> xg_e[j],
        #   t=3 -> xg_o[j],   t=4 -> xg_e[j+1]
        tap_layout = ((0, 0), (1, 0), (0, 1), (1, 1), (0, 2))  # (phase, start)
        src0, st0 = tap_layout[0]
        acc = jnp.dot(w2_ref[0], xg_ref[src0 * G:(src0 + 1) * G, st0:st0 + Lo],
                      preferred_element_type=jnp.float32)
        for t in range(1, 5):
            src, st = tap_layout[t]
            acc = acc + jnp.dot(w2_ref[t],
                                xg_ref[src * G:(src + 1) * G, st:st + Lo],
                                preferred_element_type=jnp.float32)
        branch1 = _leaky(acc + bc2_ref[...])

        # --- cv branch: Conv1d(c1, c2, 1, 2, 0) + BN + ReLU (bias/BN folded) -
        cv = jnp.dot(wcv_ref[...], xe,
                     preferred_element_type=jnp.float32) + bcv_ref[...]
        branch2 = jnp.maximum(cv, 0.0)

        o_ref[0] = branch1 + branch2

    return kernel


# ---------------------------------------------------------------------------
# Wrapper-side weight packing (BN folding, phase split, channel padding, bf16).
# ---------------------------------------------------------------------------
def _pad_vec(v, n):
    return jnp.concatenate([v, jnp.zeros((n - v.shape[0],), v.dtype)])


def _pack_weights(p, c1, c2):
    Cp = _round_up(c1, 16)
    G = 3 * Cp
    c2p = _round_up(c2, 16)
    inter = p['wf1'].shape[0]
    interp = _round_up(inter, 8)

    # fused inception weight: rows = [even | odd] x [conv1 | conv2 | conv3],
    # cols = [xe shifts -2..2 | xo shifts -2..2], each block Cp wide.
    convs = ((p['w1'], p['s1'], 5, 2),
             (p['w2'], p['s2'], 7, 3),
             (p['w3'], p['s3'], 9, 4))
    winc = jnp.zeros((2 * G, 10 * Cp), jnp.float32)
    for ci, (w, s, k, pad) in enumerate(convs):
        ws = s[:, None, None] * w                   # (c1, c1, k), BN folded
        for t in range(k):
            d = t - pad
            blk = ws[:, :, t]
            # even output phase: x[2j + d]
            if d % 2 == 0:
                src, sh = 0, d // 2
            else:
                src, sh = 1, (d - 1) // 2
            r0, c0 = ci * Cp, (src * 5 + sh + 2) * Cp
            winc = winc.at[r0:r0 + c1, c0:c0 + c1].set(blk)
            # odd output phase: x[2j + 1 + d]
            if d % 2 == 0:
                src, sh = 1, d // 2
            else:
                src, sh = 0, (d + 1) // 2
            r0, c0 = G + ci * Cp, (src * 5 + sh + 2) * Cp
            winc = winc.at[r0:r0 + c1, c0:c0 + c1].set(blk)
    bcat = jnp.concatenate([_pad_vec(p['b1'], Cp), _pad_vec(p['b2'], Cp),
                            _pad_vec(p['b3'], Cp)])
    binc = jnp.concatenate([bcat, bcat])[:, None]            # (2G, 1)

    # SE (ConvAttention) 1x1 convs, BN folded, group-padded layout (kept f32).
    wf1 = p['sf1'][:, None] * p['wf1'][:, :, 0]              # (inter, 3c1)
    wf2 = p['sf2'][:, None] * p['wf2'][:, :, 0]              # (3c1, inter)
    wf1p = jnp.zeros((interp, G), jnp.float32)
    wf2p = jnp.zeros((G, interp), jnp.float32)
    for gi in range(3):
        wf1p = wf1p.at[:inter, gi * Cp:gi * Cp + c1].set(wf1[:, gi * c1:(gi + 1) * c1])
        wf2p = wf2p.at[gi * Cp:gi * Cp + c1, :inter].set(wf2[gi * c1:(gi + 1) * c1, :])
    bf1 = _pad_vec(p['bf1'], interp)[:, None]
    bf2 = jnp.concatenate([_pad_vec(p['bf2'][gi * c1:(gi + 1) * c1], Cp)
                           for gi in range(3)])[:, None]

    # conv_2 weight split into 5 tap blocks: (5, c2p, G), BN scale folded.
    wc2s = p['sc2'][:, None, None] * p['wc2']                # (c2, 3c1, 5)
    w2 = jnp.zeros((5, c2p, G), jnp.float32)
    for t in range(5):
        for gi in range(3):
            w2 = w2.at[t, :c2, gi * Cp:gi * Cp + c1].set(
                wc2s[:, gi * c1:(gi + 1) * c1, t])
    bc2 = _pad_vec(p['bc2'], c2p)[:, None]

    # cv branch: conv bias + BN folded.
    wcv = p['scv'][:, None] * p['wcv'][:, :, 0]              # (c2, c1)
    wcvp = jnp.zeros((c2p, Cp), jnp.float32).at[:c2, :c1].set(wcv)
    bcv = _pad_vec(p['scv'] * p['bias_cv'] + p['bcv_bn'], c2p)[:, None]

    weights = (winc.astype(jnp.bfloat16), binc,
               wf1p, bf1, wf2p, bf2,
               w2.astype(jnp.bfloat16), bc2,
               wcvp.astype(jnp.bfloat16), bcv)
    return weights, (Cp, c2p)


def _vmem_limit_bytes():
    cap = 128 * 1024 * 1024
    try:
        cap = int(pltpu.get_tpu_info().vmem_capacity_bytes)
    except Exception:
        pass
    return (cap // 4) * 3            # ~75% of physical VMEM (48 MiB on v7x)


def bottleneck_pallas(x, p, c2):
    N, c1, L = x.shape
    assert L % 2 == 0, "kernel assumes an even sequence length"
    Lo_orig = L // 2
    Lo = _round_up(Lo_orig, 128)     # lane-dense MXU N-dim / vst width

    weights, (Cp, c2p) = _pack_weights(p, c1, c2)
    G = 3 * Cp

    # Deinterleave into even/odd phases (wrapper side, handled by XLA), pad
    # channels to a 16-multiple and lanes to a 128-multiple, cast to bf16.
    xe = jnp.pad(x[:, :, 0::2].astype(jnp.bfloat16),
                 ((0, 0), (0, Cp - c1), (0, Lo - Lo_orig)))
    xo = jnp.pad(x[:, :, 1::2].astype(jnp.bfloat16),
                 ((0, 0), (0, Cp - c1), (0, Lo - Lo_orig)))

    args = (xe, xo) + weights

    def batch_spec(shape):
        return pl.BlockSpec((1,) + tuple(shape[1:]), lambda b: (b, 0, 0))

    def full_spec(arr):
        nd = arr.ndim
        return pl.BlockSpec(tuple(arr.shape), lambda b, nd=nd: (0,) * nd)

    in_specs = [batch_spec(xe.shape), batch_spec(xo.shape)]
    in_specs += [full_spec(w) for w in weights]

    kernel = _make_kernel(Lo_orig, L)

    out = pl.pallas_call(
        kernel,
        out_shape=jax.ShapeDtypeStruct((N, c2p, Lo), jnp.float32),
        grid_spec=pltpu.PrefetchScalarGridSpec(
            num_scalar_prefetch=0,
            grid=(N,),
            in_specs=in_specs,
            out_specs=pl.BlockSpec((1, c2p, Lo), lambda b: (b, 0, 0)),
            scratch_shapes=[
                pltpu.VMEM((2 * Cp, Lo + 4), jnp.bfloat16),   # padded [xe; xo]
                pltpu.VMEM((10 * Cp, Lo), jnp.bfloat16),      # inception im2col
                pltpu.VMEM((2 * G, Lo + 2), jnp.bfloat16),    # padded gated acts
            ]),
        compiler_params=pltpu.CompilerParams(
            dimension_semantics=("parallel",),
            vmem_limit_bytes=_vmem_limit_bytes()),
    )(*args)
    return out[:, :c2, :Lo_orig]


# ---------------------------------------------------------------------------
# Parameter init + pure-JAX reference (inference-mode BatchNorm).
# ---------------------------------------------------------------------------
def init_params(key, c1, c2):
    inter = max(3 * c1 // 4, 16)
    keys = iter(jax.random.split(key, 64))

    def w(shape, scale=0.1):
        return scale * jax.random.normal(next(keys), shape, jnp.float32)

    def bn(c):
        gamma = 1.0 + 0.1 * jax.random.normal(next(keys), (c,), jnp.float32)
        beta = 0.1 * jax.random.normal(next(keys), (c,), jnp.float32)
        mean = 0.05 * jax.random.normal(next(keys), (c,), jnp.float32)
        var = jax.random.uniform(next(keys), (c,), jnp.float32, minval=0.5, maxval=1.5)
        scale = gamma / jnp.sqrt(var + 1e-5)
        bias = beta - mean * scale
        return scale, bias

    p = {}
    p['w1'] = w((c1, c1, 5)); p['s1'], p['b1'] = bn(c1)
    p['w2'] = w((c1, c1, 7)); p['s2'], p['b2'] = bn(c1)
    p['w3'] = w((c1, c1, 9)); p['s3'], p['b3'] = bn(c1)
    p['wf1'] = w((inter, 3 * c1, 1)); p['sf1'], p['bf1'] = bn(inter)
    p['wf2'] = w((3 * c1, inter, 1)); p['sf2'], p['bf2'] = bn(3 * c1)
    p['wc2'] = w((c2, 3 * c1, 5)); p['sc2'], p['bc2'] = bn(c2)
    p['wcv'] = w((c2, c1, 1)); p['bias_cv'] = w((c2,))
    p['scv'], p['bcv_bn'] = bn(c2)
    return p


def reference_forward(x, p):
    leaky = lambda v: jnp.where(v >= 0, v, LEAKY_SLOPE * v)

    def cba(x, w, s, b, stride, pad, act):
        y = lax.conv_general_dilated(x, w, (stride,), [(pad, pad)],
                                     dimension_numbers=('NCH', 'OIH', 'NCH'))
        return act(y * s[None, :, None] + b[None, :, None])

    x1 = cba(x, p['w1'], p['s1'], p['b1'], 1, 2, leaky)
    x2 = cba(x, p['w2'], p['s2'], p['b2'], 1, 3, leaky)
    x3 = cba(x, p['w3'], p['s3'], p['b3'], 1, 4, leaky)
    xc = jnp.concatenate([x1, x2, x3], axis=1)
    y = jnp.mean(xc, axis=2, keepdims=True)
    y = cba(y, p['wf1'], p['sf1'], p['bf1'], 1, 0, leaky)
    y = cba(y, p['wf2'], p['sf2'], p['bf2'], 1, 0, leaky)
    xse = xc * jax.nn.sigmoid(y)
    b1 = cba(xse, p['wc2'], p['sc2'], p['bc2'], 2, 2, leaky)
    ycv = lax.conv_general_dilated(x, p['wcv'], (2,), [(0, 0)],
                                   dimension_numbers=('NCH', 'OIH', 'NCH'))
    ycv = ycv + p['bias_cv'][None, :, None]
    b2 = jax.nn.relu(ycv * p['scv'][None, :, None] + p['bcv_bn'][None, :, None])
    return b1 + b2


if __name__ == "__main__":
    key = jax.random.PRNGKey(0)
    kx, kp = jax.random.split(key)

    N, c1, c2, L = 2, 4, 8, 16
    x = jax.random.normal(kx, (N, c1, L), jnp.float32)
    params = init_params(kp, c1, c2)

    out = jax.block_until_ready(bottleneck_pallas(x, params, c2))
    ref = jax.block_until_ready(reference_forward(x, params))

    assert out.shape == ref.shape == (N, c2, L // 2)
    max_err = jnp.max(jnp.abs(out - ref))
    # bf16 matmul operands with f32 accumulation -> relaxed tolerance.
    assert jnp.allclose(out, ref, rtol=5e-2, atol=5e-2), f"max abs diff {max_err}"

    print("KERNEL_OK")
</pallas_src>

<mosaic_0001>
module attributes {stable_mosaic.version = 11 : i64} {
  func.func @kernel(%arg0: i32, %arg1: memref<1x16x128xbf16, #tpu.memory_space<vmem>>, %arg2: memref<1x16x128xbf16, #tpu.memory_space<vmem>>, %arg3: memref<96x160xbf16, #tpu.memory_space<vmem>>, %arg4: memref<96x1xf32, #tpu.memory_space<vmem>>, %arg5: memref<16x48xf32, #tpu.memory_space<vmem>>, %arg6: memref<16x1xf32, #tpu.memory_space<vmem>>, %arg7: memref<48x16xf32, #tpu.memory_space<vmem>>, %arg8: memref<48x1xf32, #tpu.memory_space<vmem>>, %arg9: memref<5x16x48xbf16, #tpu.memory_space<vmem>>, %arg10: memref<16x1xf32, #tpu.memory_space<vmem>>, %arg11: memref<16x16xbf16, #tpu.memory_space<vmem>>, %arg12: memref<16x1xf32, #tpu.memory_space<vmem>>, %arg13: memref<1x16x128xf32, #tpu.memory_space<vmem>>, %arg14: memref<32x132xbf16, #tpu.memory_space<vmem>>, %arg15: memref<160x128xbf16, #tpu.memory_space<vmem>>, %arg16: memref<96x130xbf16, #tpu.memory_space<vmem>>) attributes {dimension_semantics = [#tpu.dimension_semantics<parallel>], iteration_bounds = array<i64: 2>, scalar_prefetch = 0 : i64, scratch_operands = 3 : i64, tpu.core_type = #tpu.core_type<tc>, window_params = [{transform_indices = @transform_0, window_bounds = array<i64: 1, 16, 128>}, {transform_indices = @transform_1, window_bounds = array<i64: 1, 16, 128>}, {pipeline_mode = #tpu.pipeline_mode<synchronous>, transform_indices = @transform_2, window_bounds = array<i64: 96, 160>}, {pipeline_mode = #tpu.pipeline_mode<synchronous>, transform_indices = @transform_3, window_bounds = array<i64: 96, 1>}, {pipeline_mode = #tpu.pipeline_mode<synchronous>, transform_indices = @transform_4, window_bounds = array<i64: 16, 48>}, {pipeline_mode = #tpu.pipeline_mode<synchronous>, transform_indices = @transform_5, window_bounds = array<i64: 16, 1>}, {pipeline_mode = #tpu.pipeline_mode<synchronous>, transform_indices = @transform_6, window_bounds = array<i64: 48, 16>}, {pipeline_mode = #tpu.pipeline_mode<synchronous>, transform_indices = @transform_7, window_bounds = array<i64: 48, 1>}, {pipeline_mode = #tpu.pipeline_mode<synchronous>, transform_indices = @transform_8, window_bounds = array<i64: 5, 16, 48>}, {pipeline_mode = #tpu.pipeline_mode<synchronous>, transform_indices = @transform_9, window_bounds = array<i64: 16, 1>}, {pipeline_mode = #tpu.pipeline_mode<synchronous>, transform_indices = @transform_10, window_bounds = array<i64: 16, 16>}, {pipeline_mode = #tpu.pipeline_mode<synchronous>, transform_indices = @transform_11, window_bounds = array<i64: 16, 1>}, {transform_indices = @transform_12, window_bounds = array<i64: 1, 16, 128>}]} {
    %cst = arith.constant 0.000000e+00 : bf16
    %0 = vector.broadcast %cst : bf16 to vector<32x2xbf16>
    %c0 = arith.constant 0 : index
    %c0_0 = arith.constant 0 : index
    %1 = vector.load %arg14[%c0, %c0_0] : memref<32x132xbf16, #tpu.memory_space<vmem>>, vector<32x2xbf16>
    tpu.vector_store %arg14[%c0, %c0_0], %0 {strides = array<i32>} : memref<32x132xbf16, #tpu.memory_space<vmem>>, vector<32x2xbf16>,
    %c0_1 = arith.constant 0 : index
    %c130 = arith.constant 130 : index
    %2 = vector.load %arg14[%c0_1, %c130] : memref<32x132xbf16, #tpu.memory_space<vmem>>, vector<32x2xbf16>
    tpu.vector_store %arg14[%c0_1, %c130], %0 {strides = array<i32>} : memref<32x132xbf16, #tpu.memory_space<vmem>>, vector<32x2xbf16>,
    %cst_2 = arith.constant 0.000000e+00 : bf16
    %3 = vector.broadcast %cst_2 : bf16 to vector<96x1xbf16>
    %c0_3 = arith.constant 0 : index
    %c0_4 = arith.constant 0 : index
    %4 = vector.load %arg16[%c0_3, %c0_4] : memref<96x130xbf16, #tpu.memory_space<vmem>>, vector<96x1xbf16>
    tpu.vector_store %arg16[%c0_3, %c0_4], %3 {strides = array<i32>} : memref<96x130xbf16, #tpu.memory_space<vmem>>, vector<96x1xbf16>,
    %c0_5 = arith.constant 0 : index
    %c129 = arith.constant 129 : index
    %5 = vector.load %arg16[%c0_5, %c129] : memref<96x130xbf16, #tpu.memory_space<vmem>>, vector<96x1xbf16>
    tpu.vector_store %arg16[%c0_5, %c129], %3 {strides = array<i32>} : memref<96x130xbf16, #tpu.memory_space<vmem>>, vector<96x1xbf16>,
    %c0_6 = arith.constant 0 : index
    %c0_7 = arith.constant 0 : index
    %c0_8 = arith.constant 0 : index
    %6 = vector.load %arg1[%c0_6, %c0_7, %c0_8] : memref<1x16x128xbf16, #tpu.memory_space<vmem>>, vector<1x16x128xbf16>
    %7 = vector.shape_cast %6 : vector<1x16x128xbf16> to vector<16x128xbf16>
    %c0_9 = arith.constant 0 : index
    %c0_10 = arith.constant 0 : index
    %c0_11 = arith.constant 0 : index
    %8 = vector.load %arg2[%c0_9, %c0_10, %c0_11] : memref<1x16x128xbf16, #tpu.memory_space<vmem>>, vector<1x16x128xbf16>
    %9 = vector.shape_cast %8 : vector<1x16x128xbf16> to vector<16x128xbf16>
    %c0_12 = arith.constant 0 : index
    %c2 = arith.constant 2 : index
    %10 = vector.load %arg14[%c0_12, %c2] : memref<32x132xbf16, #tpu.memory_space<vmem>>, vector<16x128xbf16>
    tpu.vector_store %arg14[%c0_12, %c2], %7 {strides = array<i32>} : memref<32x132xbf16, #tpu.memory_space<vmem>>, vector<16x128xbf16>,
    %c16 = arith.constant 16 : index
    %c2_13 = arith.constant 2 : index
    %11 = vector.load %arg14[%c16, %c2_13] : memref<32x132xbf16, #tpu.memory_space<vmem>>, vector<16x128xbf16>
    tpu.vector_store %arg14[%c16, %c2_13], %9 {strides = array<i32>} : memref<32x132xbf16, #tpu.memory_space<vmem>>, vector<16x128xbf16>,
    %c0_14 = arith.constant 0 : index
    %c0_15 = arith.constant 0 : index
    %12 = vector.load %arg14[%c0_14, %c0_15] : memref<32x132xbf16, #tpu.memory_space<vmem>>, vector<16x128xbf16>
    %c0_16 = arith.constant 0 : index
    %c0_17 = arith.constant 0 : index
    %13 = vector.load %arg15[%c0_16, %c0_17] : memref<160x128xbf16, #tpu.memory_space<vmem>>, vector<16x128xbf16>
    tpu.vector_store %arg15[%c0_16, %c0_17], %12 {strides = array<i32>} : memref<160x128xbf16, #tpu.memory_space<vmem>>, vector<16x128xbf16>,
    %c0_18 = arith.constant 0 : index
    %c1 = arith.constant 1 : index
    %14 = vector.load %arg14[%c0_18, %c1] : memref<32x132xbf16, #tpu.memory_space<vmem>>, vector<16x128xbf16>
    %c16_19 = arith.constant 16 : index
    %c0_20 = arith.constant 0 : index
    %15 = vector.load %arg15[%c16_19, %c0_20] : memref<160x128xbf16, #tpu.memory_space<vmem>>, vector<16x128xbf16>
    tpu.vector_store %arg15[%c16_19, %c0_20], %14 {strides = array<i32>} : memref<160x128xbf16, #tpu.memory_space<vmem>>, vector<16x128xbf16>,
    %c0_21 = arith.constant 0 : index
    %c2_22 = arith.constant 2 : index
    %16 = vector.load %arg14[%c0_21, %c2_22] : memref<32x132xbf16, #tpu.memory_space<vmem>>, vector<16x128xbf16>
    %c32 = arith.constant 32 : index
    %c0_23 = arith.constant 0 : index
    %17 = vector.load %arg15[%c32, %c0_23] : memref<160x128xbf16, #tpu.memory_space<vmem>>, vector<16x128xbf16>
    tpu.vector_store %arg15[%c32, %c0_23], %16 {strides = array<i32>} : memref<160x128xbf16, #tpu.memory_space<vmem>>, vector<16x128xbf16>,
    %c0_24 = arith.constant 0 : index
    %c3 = arith.constant 3 : index
    %18 = vector.load %arg14[%c0_24, %c3] : memref<32x132xbf16, #tpu.memory_space<vmem>>, vector<16x128xbf16>
    %c48 = arith.constant 48 : index
    %c0_25 = arith.constant 0 : index
    %19 = vector.load %arg15[%c48, %c0_25] : memref<160x128xbf16, #tpu.memory_space<vmem>>, vector<16x128xbf16>
    tpu.vector_store %arg15[%c48, %c0_25], %18 {strides = array<i32>} : memref<160x128xbf16, #tpu.memory_space<vmem>>, vector<16x128xbf16>,
    %c0_26 = arith.constant 0 : index
    %c4 = arith.constant 4 : index
    %20 = vector.load %arg14[%c0_26, %c4] : memref<32x132xbf16, #tpu.memory_space<vmem>>, vector<16x128xbf16>
    %c64 = arith.constant 64 : index
    %c0_27 = arith.constant 0 : index
    %21 = vector.load %arg15[%c64, %c0_27] : memref<160x128xbf16, #tpu.memory_space<vmem>>, vector<16x128xbf16>
    tpu.vector_store %arg15[%c64, %c0_27], %20 {strides = array<i32>} : memref<160x128xbf16, #tpu.memory_space<vmem>>, vector<16x128xbf16>,
    %c16_28 = arith.constant 16 : index
    %c0_29 = arith.constant 0 : index
    %22 = vector.load %arg14[%c16_28, %c0_29] : memref<32x132xbf16, #tpu.memory_space<vmem>>, vector<16x128xbf16>
    %c80 = arith.constant 80 : index
    %c0_30 = arith.constant 0 : index
    %23 = vector.load %arg15[%c80, %c0_30] : memref<160x128xbf16, #tpu.memory_space<vmem>>, vector<16x128xbf16>
    tpu.vector_store %arg15[%c80, %c0_30], %22 {strides = array<i32>} : memref<160x128xbf16, #tpu.memory_space<vmem>>, vector<16x128xbf16>,
    %c16_31 = arith.constant 16 : index
    %c1_32 = arith.constant 1 : index
    %24 = vector.load %arg14[%c16_31, %c1_32] : memref<32x132xbf16, #tpu.memory_space<vmem>>, vector<16x128xbf16>
    %c96 = arith.constant 96 : index
    %c0_33 = arith.constant 0 : index
    %25 = vector.load %arg15[%c96, %c0_33] : memref<160x128xbf16, #tpu.memory_space<vmem>>, vector<16x128xbf16>
    tpu.vector_store %arg15[%c96, %c0_33], %24 {strides = array<i32>} : memref<160x128xbf16, #tpu.memory_space<vmem>>, vector<16x128xbf16>,
    %c16_34 = arith.constant 16 : index
    %c2_35 = arith.constant 2 : index
    %26 = vector.load %arg14[%c16_34, %c2_35] : memref<32x132xbf16, #tpu.memory_space<vmem>>, vector<16x128xbf16>
    %c112 = arith.constant 112 : index
    %c0_36 = arith.constant 0 : index
    %27 = vector.load %arg15[%c112, %c0_36] : memref<160x128xbf16, #tpu.memory_space<vmem>>, vector<16x128xbf16>
    tpu.vector_store %arg15[%c112, %c0_36], %26 {strides = array<i32>} : memref<160x128xbf16, #tpu.memory_space<vmem>>, vector<16x128xbf16>,
    %c16_37 = arith.constant 16 : index
    %c3_38 = arith.constant 3 : index
    %28 = vector.load %arg14[%c16_37, %c3_38] : memref<32x132xbf16, #tpu.memory_space<vmem>>, vector<16x128xbf16>
    %c128 = arith.constant 128 : index
    %c0_39 = arith.constant 0 : index
    %29 = vector.load %arg15[%c128, %c0_39] : memref<160x128xbf16, #tpu.memory_space<vmem>>, vector<16x128xbf16>
    tpu.vector_store %arg15[%c128, %c0_39], %28 {strides = array<i32>} : memref<160x128xbf16, #tpu.memory_space<vmem>>, vector<16x128xbf16>,
    %c16_40 = arith.constant 16 : index
    %c4_41 = arith.constant 4 : index
    %30 = vector.load %arg14[%c16_40, %c4_41] : memref<32x132xbf16, #tpu.memory_space<vmem>>, vector<16x128xbf16>
    %c144 = arith.constant 144 : index
    %c0_42 = arith.constant 0 : index
    %31 = vector.load %arg15[%c144, %c0_42] : memref<160x128xbf16, #tpu.memory_space<vmem>>, vector<16x128xbf16>
    tpu.vector_store %arg15[%c144, %c0_42], %30 {strides = array<i32>} : memref<160x128xbf16, #tpu.memory_space<vmem>>, vector<16x128xbf16>,
    %c0_43 = arith.constant 0 : index
    %c0_44 = arith.constant 0 : index
    %32 = vector.load %arg3[%c0_43, %c0_44] : memref<96x160xbf16, #tpu.memory_space<vmem>>, vector<96x160xbf16>
    %c0_45 = arith.constant 0 : index
    %c0_46 = arith.constant 0 : index
    %33 = vector.load %arg15[%c0_45, %c0_46] : memref<160x128xbf16, #tpu.memory_space<vmem>>, vector<160x128xbf16>
    %cst_47 = arith.constant dense<0.000000e+00> : vector<96x128xf32>
    %34 = tpu.matmul %32, %33, %cst_47 {dimension_numbers = #tpu.dot_dimension_numbers<[1], [0], [0], [1], [0, 0, 1, 1], [], []>} : vector<96x160xbf16>, vector<160x128xbf16>, vector<96x128xf32> -> vector<96x128xf32>
    %c0_48 = arith.constant 0 : index
    %c0_49 = arith.constant 0 : index
    %35 = vector.load %arg4[%c0_48, %c0_49] : memref<96x1xf32, #tpu.memory_space<vmem>>, vector<96x1xf32>
    %36 = vector.broadcast %35 : vector<96x1xf32> to vector<96x128xf32>
    %37 = arith.addf %34, %36 : vector<96x128xf32>
    %cst_50 = arith.constant 0.000000e+00 : f32
    %38 = vector.broadcast %cst_50 : f32 to vector<96x128xf32>
    %39 = arith.cmpf oge, %37, %38 : vector<96x128xf32>
    %cst_51 = arith.constant 0.00999999977 : f32
    %40 = vector.broadcast %cst_51 : f32 to vector<96x128xf32>
    %41 = arith.mulf %40, %37 : vector<96x128xf32>
    %42 = arith.select %39, %37, %41 : vector<96x128xi1>, vector<96x128xf32>
    %43 = tpu.iota {dimensions = array<i32: 1>} : vector<1x128xi32>
    %c8_i32 = arith.constant 8 : i32
    %44 = vector.broadcast %c8_i32 : i32 to vector<1x128xi32>
    %45 = arith.cmpi slt, %43, %44 : vector<1x128xi32>
    %cst_52 = arith.constant 0.000000e+00 : f32
    %46 = vector.shape_cast %45 : vector<1x128xi1> to vector<1x128xi1>
    %47 = vector.broadcast %46 : vector<1x128xi1> to vector<96x128xi1>
    %48 = vector.broadcast %cst_52 : f32 to vector<96x128xf32>
    %49 = arith.select %47, %42, %48 : vector<96x128xi1>, vector<96x128xf32>
    %50 = vector.extract_strided_slice %49 {offsets = [0, 0], sizes = [48, 128], strides = [1, 1]} : vector<96x128xf32> to vector<48x128xf32>
    %51 = vector.extract_strided_slice %49 {offsets = [48, 0], sizes = [48, 128], strides = [1, 1]} : vector<96x128xf32> to vector<48x128xf32>
    %cst_53 = arith.constant dense<0.000000e+00> : vector<48xf32>
    %52 = vector.multi_reduction <add>, %50, %cst_53 [1] : vector<48x128xf32> to vector<48xf32>
    %53 = vector.shape_cast %52 : vector<48xf32> to vector<48x1xf32>
    %cst_54 = arith.constant dense<0.000000e+00> : vector<48xf32>
    %54 = vector.multi_reduction <add>, %51, %cst_54 [1] : vector<48x128xf32> to vector<48xf32>
    %55 = vector.shape_cast %54 : vector<48xf32> to vector<48x1xf32>
    %56 = arith.addf %53, %55 : vector<48x1xf32>
    %cst_55 = arith.constant 6.250000e-02 : f32
    %57 = vector.broadcast %cst_55 : f32 to vector<48x1xf32>
    %58 = arith.mulf %56, %57 : vector<48x1xf32>
    %c0_56 = arith.constant 0 : index
    %c0_57 = arith.constant 0 : index
    %59 = vector.load %arg5[%c0_56, %c0_57] : memref<16x48xf32, #tpu.memory_space<vmem>>, vector<16x48xf32>
    %cst_58 = arith.constant dense<0.000000e+00> : vector<16x1xf32>
    %60 = tpu.matmul %59, %58, %cst_58 {dimension_numbers = #tpu.dot_dimension_numbers<[1], [0], [0], [1], [0, 0, 1, 1], [], []>} : vector<16x48xf32>, vector<48x1xf32>, vector<16x1xf32> -> vector<16x1xf32>
    %c0_59 = arith.constant 0 : index
    %c0_60 = arith.constant 0 : index
    %61 = vector.load %arg6[%c0_59, %c0_60] : memref<16x1xf32, #tpu.memory_space<vmem>>, vector<16x1xf32>
    %62 = arith.addf %60, %61 : vector<16x1xf32>
    %cst_61 = arith.constant 0.000000e+00 : f32
    %63 = vector.broadcast %cst_61 : f32 to vector<16x1xf32>
    %64 = arith.cmpf oge, %62, %63 : vector<16x1xf32>
    %cst_62 = arith.constant 0.00999999977 : f32
    %65 = vector.broadcast %cst_62 : f32 to vector<16x1xf32>
    %66 = arith.mulf %65, %62 : vector<16x1xf32>
    %67 = arith.select %64, %62, %66 : vector<16x1xi1>, vector<16x1xf32>
    %c0_63 = arith.constant 0 : index
    %c0_64 = arith.constant 0 : index
    %68 = vector.load %arg7[%c0_63, %c0_64] : memref<48x16xf32, #tpu.memory_space<vmem>>, vector<48x16xf32>
    %cst_65 = arith.constant dense<0.000000e+00> : vector<48x1xf32>
    %69 = tpu.matmul %68, %67, %cst_65 {dimension_numbers = #tpu.dot_dimension_numbers<[1], [0], [0], [1], [0, 0, 1, 1], [], []>} : vector<48x16xf32>, vector<16x1xf32>, vector<48x1xf32> -> vector<48x1xf32>
    %c0_66 = arith.constant 0 : index
    %c0_67 = arith.constant 0 : index
    %70 = vector.load %arg8[%c0_66, %c0_67] : memref<48x1xf32, #tpu.memory_space<vmem>>, vector<48x1xf32>
    %71 = arith.addf %69, %70 : vector<48x1xf32>
    %cst_68 = arith.constant 0.000000e+00 : f32
    %72 = vector.broadcast %cst_68 : f32 to vector<48x1xf32>
    %73 = arith.cmpf oge, %71, %72 : vector<48x1xf32>
    %cst_69 = arith.constant 0.00999999977 : f32
    %74 = vector.broadcast %cst_69 : f32 to vector<48x1xf32>
    %75 = arith.mulf %74, %71 : vector<48x1xf32>
    %76 = arith.select %73, %71, %75 : vector<48x1xi1>, vector<48x1xf32>
    %77 = arith.negf %76 : vector<48x1xf32>
    %78 = math.exp %77 : vector<48x1xf32>
    %cst_70 = arith.constant 1.000000e+00 : f32
    %79 = vector.broadcast %cst_70 : f32 to vector<48x1xf32>
    %80 = arith.addf %79, %78 : vector<48x1xf32>
    %81 = arith.divf %79, %80 : vector<48x1xf32>
    %82 = vector.broadcast %81 : vector<48x1xf32> to vector<48x128xf32>
    %83 = arith.mulf %50, %82 : vector<48x128xf32>
    %84 = arith.truncf %83 : vector<48x128xf32> to vector<48x128xbf16>
    %c0_71 = arith.constant 0 : index
    %c1_72 = arith.constant 1 : index
    %85 = vector.load %arg16[%c0_71, %c1_72] : memref<96x130xbf16, #tpu.memory_space<vmem>>, vector<48x128xbf16>
    tpu.vector_store %arg16[%c0_71, %c1_72], %84 {strides = array<i32>} : memref<96x130xbf16, #tpu.memory_space<vmem>>, vector<48x128xbf16>,
    %86 = vector.broadcast %81 : vector<48x1xf32> to vector<48x128xf32>
    %87 = arith.mulf %51, %86 : vector<48x128xf32>
    %88 = arith.truncf %87 : vector<48x128xf32> to vector<48x128xbf16>
    %c48_73 = arith.constant 48 : index
    %c1_74 = arith.constant 1 : index
    %89 = vector.load %arg16[%c48_73, %c1_74] : memref<96x130xbf16, #tpu.memory_space<vmem>>, vector<48x128xbf16>
    tpu.vector_store %arg16[%c48_73, %c1_74], %88 {strides = array<i32>} : memref<96x130xbf16, #tpu.memory_space<vmem>>, vector<48x128xbf16>,
    %c0_75 = arith.constant 0 : index
    %c0_76 = arith.constant 0 : index
    %c0_77 = arith.constant 0 : index
    %90 = vector.load %arg9[%c0_75, %c0_76, %c0_77] : memref<5x16x48xbf16, #tpu.memory_space<vmem>>, vector<1x16x48xbf16>
    %91 = vector.shape_cast %90 : vector<1x16x48xbf16> to vector<16x48xbf16>
    %c0_78 = arith.constant 0 : index
    %c0_79 = arith.constant 0 : index
    %92 = vector.load %arg16[%c0_78, %c0_79] : memref<96x130xbf16, #tpu.memory_space<vmem>>, vector<48x128xbf16>
    %cst_80 = arith.constant dense<0.000000e+00> : vector<16x128xf32>
    %93 = tpu.matmul %91, %92, %cst_80 {dimension_numbers = #tpu.dot_dimension_numbers<[1], [0], [0], [1], [0, 0, 1, 1], [], []>} : vector<16x48xbf16>, vector<48x128xbf16>, vector<16x128xf32> -> vector<16x128xf32>
    %c1_81 = arith.constant 1 : index
    %c0_82 = arith.constant 0 : index
    %c0_83 = arith.constant 0 : index
    %94 = vector.load %arg9[%c1_81, %c0_82, %c0_83] : memref<5x16x48xbf16, #tpu.memory_space<vmem>>, vector<1x16x48xbf16>
    %95 = vector.shape_cast %94 : vector<1x16x48xbf16> to vector<16x48xbf16>
    %c48_84 = arith.constant 48 : index
    %c0_85 = arith.constant 0 : index
    %96 = vector.load %arg16[%c48_84, %c0_85] : memref<96x130xbf16, #tpu.memory_space<vmem>>, vector<48x128xbf16>
    %cst_86 = arith.constant dense<0.000000e+00> : vector<16x128xf32>
    %97 = tpu.matmul %95, %96, %cst_86 {dimension_numbers = #tpu.dot_dimension_numbers<[1], [0], [0], [1], [0, 0, 1, 1], [], []>} : vector<16x48xbf16>, vector<48x128xbf16>, vector<16x128xf32> -> vector<16x128xf32>
    %98 = arith.addf %93, %97 : vector<16x128xf32>
    %c2_87 = arith.constant 2 : index
    %c0_88 = arith.constant 0 : index
    %c0_89 = arith.constant 0 : index
    %99 = vector.load %arg9[%c2_87, %c0_88, %c0_89] : memref<5x16x48xbf16, #tpu.memory_space<vmem>>, vector<1x16x48xbf16>
    %100 = vector.shape_cast %99 : vector<1x16x48xbf16> to vector<16x48xbf16>
    %c0_90 = arith.constant 0 : index
    %c1_91 = arith.constant 1 : index
    %101 = vector.load %arg16[%c0_90, %c1_91] : memref<96x130xbf16, #tpu.memory_space<vmem>>, vector<48x128xbf16>
    %cst_92 = arith.constant dense<0.000000e+00> : vector<16x128xf32>
    %102 = tpu.matmul %100, %101, %cst_92 {dimension_numbers = #tpu.dot_dimension_numbers<[1], [0], [0], [1], [0, 0, 1, 1], [], []>} : vector<16x48xbf16>, vector<48x128xbf16>, vector<16x128xf32> -> vector<16x128xf32>
    %103 = arith.addf %98, %102 : vector<16x128xf32>
    %c3_93 = arith.constant 3 : index
    %c0_94 = arith.constant 0 : index
    %c0_95 = arith.constant 0 : index
    %104 = vector.load %arg9[%c3_93, %c0_94, %c0_95] : memref<5x16x48xbf16, #tpu.memory_space<vmem>>, vector<1x16x48xbf16>
    %105 = vector.shape_cast %104 : vector<1x16x48xbf16> to vector<16x48xbf16>
    %c48_96 = arith.constant 48 : index
    %c1_97 = arith.constant 1 : index
    %106 = vector.load %arg16[%c48_96, %c1_97] : memref<96x130xbf16, #tpu.memory_space<vmem>>, vector<48x128xbf16>
    %cst_98 = arith.constant dense<0.000000e+00> : vector<16x128xf32>
    %107 = tpu.matmul %105, %106, %cst_98 {dimension_numbers = #tpu.dot_dimension_numbers<[1], [0], [0], [1], [0, 0, 1, 1], [], []>} : vector<16x48xbf16>, vector<48x128xbf16>, vector<16x128xf32> -> vector<16x128xf32>
    %108 = arith.addf %103, %107 : vector<16x128xf32>
    %c4_99 = arith.constant 4 : index
    %c0_100 = arith.constant 0 : index
    %c0_101 = arith.constant 0 : index
    %109 = vector.load %arg9[%c4_99, %c0_100, %c0_101] : memref<5x16x48xbf16, #tpu.memory_space<vmem>>, vector<1x16x48xbf16>
    %110 = vector.shape_cast %109 : vector<1x16x48xbf16> to vector<16x48xbf16>
    %c0_102 = arith.constant 0 : index
    %c2_103 = arith.constant 2 : index
    %111 = vector.load %arg16[%c0_102, %c2_103] : memref<96x130xbf16, #tpu.memory_space<vmem>>, vector<48x128xbf16>
    %cst_104 = arith.constant dense<0.000000e+00> : vector<16x128xf32>
    %112 = tpu.matmul %110, %111, %cst_104 {dimension_numbers = #tpu.dot_dimension_numbers<[1], [0], [0], [1], [0, 0, 1, 1], [], []>} : vector<16x48xbf16>, vector<48x128xbf16>, vector<16x128xf32> -> vector<16x128xf32>
    %113 = arith.addf %108, %112 : vector<16x128xf32>
    %c0_105 = arith.constant 0 : index
    %c0_106 = arith.constant 0 : index
    %114 = vector.load %arg10[%c0_105, %c0_106] : memref<16x1xf32, #tpu.memory_space<vmem>>, vector<16x1xf32>
    %115 = vector.broadcast %114 : vector<16x1xf32> to vector<16x128xf32>
    %116 = arith.addf %113, %115 : vector<16x128xf32>
    %cst_107 = arith.constant 0.000000e+00 : f32
    %117 = vector.broadcast %cst_107 : f32 to vector<16x128xf32>
    %118 = arith.cmpf oge, %116, %117 : vector<16x128xf32>
    %cst_108 = arith.constant 0.00999999977 : f32
    %119 = vector.broadcast %cst_108 : f32 to vector<16x128xf32>
    %120 = arith.mulf %119, %116 : vector<16x128xf32>
    %121 = arith.select %118, %116, %120 : vector<16x128xi1>, vector<16x128xf32>
    %c0_109 = arith.constant 0 : index
    %c0_110 = arith.constant 0 : index
    %122 = vector.load %arg11[%c0_109, %c0_110] : memref<16x16xbf16, #tpu.memory_space<vmem>>, vector<16x16xbf16>
    %cst_111 = arith.constant dense<0.000000e+00> : vector<16x128xf32>
    %123 = tpu.matmul %122, %7, %cst_111 {dimension_numbers = #tpu.dot_dimension_numbers<[1], [0], [0], [1], [0, 0, 1, 1], [], []>} : vector<16x16xbf16>, vector<16x128xbf16>, vector<16x128xf32> -> vector<16x128xf32>
    %c0_112 = arith.constant 0 : index
    %c0_113 = arith.constant 0 : index
    %124 = vector.load %arg12[%c0_112, %c0_113] : memref<16x1xf32, #tpu.memory_space<vmem>>, vector<16x1xf32>
    %125 = vector.broadcast %124 : vector<16x1xf32> to vector<16x128xf32>
    %126 = arith.addf %123, %125 : vector<16x128xf32>
    %cst_114 = arith.constant 0.000000e+00 : f32
    %127 = vector.broadcast %cst_114 : f32 to vector<16x128xf32>
    %128 = arith.maximumf %126, %127 : vector<16x128xf32>
    %129 = arith.addf %121, %128 : vector<16x128xf32>
    %c0_115 = arith.constant 0 : index
    %c0_116 = arith.constant 0 : index
    %c0_117 = arith.constant 0 : index
    %130 = vector.load %arg13[%c0_115, %c0_116, %c0_117] : memref<1x16x128xf32, #tpu.memory_space<vmem>>, vector<1x16x128xf32>
    %131 = vector.shape_cast %130 : vector<1x16x128xf32> to vector<16x128xf32>
    %132 = vector.shape_cast %129 : vector<16x128xf32> to vector<1x16x128xf32>
    tpu.vector_store %arg13[%c0_115, %c0_116, %c0_117], %132 {strides = array<i32>} : memref<1x16x128xf32, #tpu.memory_space<vmem>>, vector<1x16x128xf32>,
    return
  }
  func.func @transform_0(%arg0: i32) -> (i32, i32, i32) {
    %c0_i32 = arith.constant 0 : i32
    %c0_i32_0 = arith.constant 0 : i32
    %c0_i32_1 = arith.constant 0 : i32
    return %arg0, %c0_i32, %c0_i32_0 : i32, i32, i32
  }
  func.func @transform_1(%arg0: i32) -> (i32, i32, i32) {
    %c0_i32 = arith.constant 0 : i32
    %c0_i32_0 = arith.constant 0 : i32
    %c0_i32_1 = arith.constant 0 : i32
    return %arg0, %c0_i32, %c0_i32_0 : i32, i32, i32
  }
  func.func @transform_2(%arg0: i32) -> (i32, i32) {
    %c0_i32 = arith.constant 0 : i32
    %c0_i32_0 = arith.constant 0 : i32
    %c0_i32_1 = arith.constant 0 : i32
    return %c0_i32, %c0_i32_0 : i32, i32
  }
  func.func @transform_3(%arg0: i32) -> (i32, i32) {
    %c0_i32 = arith.constant 0 : i32
    %c0_i32_0 = arith.constant 0 : i32
    %c0_i32_1 = arith.constant 0 : i32
    return %c0_i32, %c0_i32_0 : i32, i32
  }
  func.func @transform_4(%arg0: i32) -> (i32, i32) {
    %c0_i32 = arith.constant 0 : i32
    %c0_i32_0 = arith.constant 0 : i32
    %c0_i32_1 = arith.constant 0 : i32
    return %c0_i32, %c0_i32_0 : i32, i32
  }
  func.func @transform_5(%arg0: i32) -> (i32, i32) {
    %c0_i32 = arith.constant 0 : i32
    %c0_i32_0 = arith.constant 0 : i32
    %c0_i32_1 = arith.constant 0 : i32
    return %c0_i32, %c0_i32_0 : i32, i32
  }
  func.func @transform_6(%arg0: i32) -> (i32, i32) {
    %c0_i32 = arith.constant 0 : i32
    %c0_i32_0 = arith.constant 0 : i32
    %c0_i32_1 = arith.constant 0 : i32
    return %c0_i32, %c0_i32_0 : i32, i32
  }
  func.func @transform_7(%arg0: i32) -> (i32, i32) {
    %c0_i32 = arith.constant 0 : i32
    %c0_i32_0 = arith.constant 0 : i32
    %c0_i32_1 = arith.constant 0 : i32
    return %c0_i32, %c0_i32_0 : i32, i32
  }
  func.func @transform_8(%arg0: i32) -> (i32, i32, i32) {
    %c0_i32 = arith.constant 0 : i32
    %c0_i32_0 = arith.constant 0 : i32
    %c0_i32_1 = arith.constant 0 : i32
    %c0_i32_2 = arith.constant 0 : i32
    return %c0_i32, %c0_i32_0, %c0_i32_1 : i32, i32, i32
  }
  func.func @transform_9(%arg0: i32) -> (i32, i32) {
    %c0_i32 = arith.constant 0 : i32
    %c0_i32_0 = arith.constant 0 : i32
    %c0_i32_1 = arith.constant 0 : i32
    return %c0_i32, %c0_i32_0 : i32, i32
  }
  func.func @transform_10(%arg0: i32) -> (i32, i32) {
    %c0_i32 = arith.constant 0 : i32
    %c0_i32_0 = arith.constant 0 : i32
    %c0_i32_1 = arith.constant 0 : i32
    return %c0_i32, %c0_i32_0 : i32, i32
  }
  func.func @transform_11(%arg0: i32) -> (i32, i32) {
    %c0_i32 = arith.constant 0 : i32
    %c0_i32_0 = arith.constant 0 : i32
    %c0_i32_1 = arith.constant 0 : i32
    return %c0_i32, %c0_i32_0 : i32, i32
  }
  func.func @transform_12(%arg0: i32) -> (i32, i32, i32) {
    %c0_i32 = arith.constant 0 : i32
    %c0_i32_0 = arith.constant 0 : i32
    %c0_i32_1 = arith.constant 0 : i32
    return %arg0, %c0_i32, %c0_i32_0 : i32, i32, i32
  }
}

</mosaic_0001>

<llo_original>
// kernel: tpu_custom_call.1
$region0: #{tpu_custom_call.1}
  #allocation0 [shape = 'u32[]', space=smem, size = 0x4, offset = 0x4, fixed_abs, tag = 'smem constant byte address 0x4 - core index']
  #allocation1 [shape = 'u32[144,128]{1,0:T(1,128)}', space=vmem, size = 0x12000, scoped, tag = 'internal scratch']
  #allocation2 [shape = 'bf16[32,132]{1,0:T(16,128)(2,1)}', space=vmem, size = 0x4000, scoped, tag = 'scratch operand']
  #allocation3 [shape = 'bf16[160,128]{1,0:T(16,128)(2,1)}', space=vmem, size = 0xa000, scoped, tag = 'scratch operand']
  #allocation4 [shape = 'bf16[96,130]{1,0:T(16,128)(2,1)}', space=vmem, size = 0xc000, scoped, tag = 'scratch operand']
  %s0 = inlined_call_operand.hbm [shape: bf16[2,16,128], index: 0, kind: input, shape index: {}]
  %s1 = inlined_call_operand.hbm [shape: bf16[2,16,128], index: 1, kind: input, shape index: {}]
  %s2 = inlined_call_operand.hbm [shape: bf16[96,160], index: 2, kind: input, shape index: {}]
  %s3 = inlined_call_operand.hbm [shape: f32[96,1], index: 3, kind: input, shape index: {}]
  %s4 = inlined_call_operand.hbm [shape: f32[16,48], index: 4, kind: input, shape index: {}]
  %s5 = inlined_call_operand.hbm [shape: f32[16,1], index: 5, kind: input, shape index: {}]
  %s6 = inlined_call_operand.hbm [shape: f32[48,16], index: 6, kind: input, shape index: {}]
  %s7 = inlined_call_operand.hbm [shape: f32[48,1], index: 7, kind: input, shape index: {}]
  %s8 = inlined_call_operand.hbm [shape: bf16[5,16,48], index: 8, kind: input, shape index: {}]
  %s9 = inlined_call_operand.hbm [shape: f32[16,1], index: 9, kind: input, shape index: {}]
  %s10 = inlined_call_operand.hbm [shape: bf16[16,16], index: 10, kind: input, shape index: {}]
  %s11 = inlined_call_operand.hbm [shape: f32[16,1], index: 11, kind: input, shape index: {}]
  %s12 = inlined_call_operand.hbm [shape: f32[2,16,128], index: 12, kind: output, shape index: {}]
  %s13 = sld [smem:[#allocation0]]
  $region129: #{tpu_custom_call.1} parent=0
    _
  %s15 = ssub.s32 1, %s13
  %s16 = scalar_select 0, %s15, %s13
  $region1: #{tpu_custom_call.1} parent=0
    #allocation5 [shape = 'u8[8192]{0}', space=vmem, size = 0x2000, scoped, tag = 'input window, operand 0']
    #allocation6 [shape = 's32[2]{0}', space=sflag, size = 0x8, scoped, tag = 'scoped memory for tpu_custom_call.1']
    #allocation7 [shape = 's32[2]{0}', space=sflag, size = 0x8, scoped, tag = 'scoped memory for tpu_custom_call.1']
    #allocation8 [shape = 'u8[8192]{0}', space=vmem, size = 0x2000, scoped, tag = 'input window, operand 1']
    #allocation9 [shape = 's32[2]{0}', space=sflag, size = 0x8, scoped, tag = 'scoped memory for tpu_custom_call.1']
    #allocation10 [shape = 'u8[49152]{0}', space=vmem, size = 0xc000, scoped, tag = 'input window, operand 2, single buffered']
    #allocation11 [shape = 'u8[49152]{0}', space=vmem, size = 0xc000, scoped, tag = 'input window, operand 3, single buffered']
    #allocation12 [shape = 's32[1]{0}', space=sflag, size = 0x4, scoped, tag = 'scoped memory for tpu_custom_call.1']
    #allocation13 [shape = 'u8[8192]{0}', space=vmem, size = 0x2000, scoped, tag = 'input window, operand 4, single buffered']
    #allocation14 [shape = 'u8[8192]{0}', space=vmem, size = 0x2000, scoped, tag = 'input window, operand 5, single buffered']
    #allocation15 [shape = 's32[1]{0}', space=sflag, size = 0x4, scoped, tag = 'scoped memory for tpu_custom_call.1']
    #allocation16 [shape = 'u8[24576]{0}', space=vmem, size = 0x6000, scoped, tag = 'input window, operand 6, single buffered']
    #allocation17 [shape = 'u8[24576]{0}', space=vmem, size = 0x6000, scoped, tag = 'input window, operand 7, single buffered']
    #allocation18 [shape = 's32[1]{0}', space=sflag, size = 0x4, scoped, tag = 'scoped memory for tpu_custom_call.1']
    #allocation19 [shape = 'u8[20480]{0}', space=vmem, size = 0x5000, scoped, tag = 'input window, operand 8, single buffered']
    #allocation20 [shape = 'u8[8192]{0}', space=vmem, size = 0x2000, scoped, tag = 'input window, operand 9, single buffered']
    #allocation21 [shape = 's32[1]{0}', space=sflag, size = 0x4, scoped, tag = 'scoped memory for tpu_custom_call.1']
    #allocation22 [shape = 'u8[4096]{0}', space=vmem, size = 0x1000, scoped, tag = 'input window, operand 10, single buffered']
    #allocation23 [shape = 'u8[8192]{0}', space=vmem, size = 0x2000, scoped, tag = 'input window, operand 11, single buffered']
    #allocation24 [shape = 's32[1]{0}', space=sflag, size = 0x4, scoped, tag = 'scoped memory for tpu_custom_call.1']
    #allocation25 [shape = 'u8[16384]{0}', space=vmem, size = 0x4000, scoped, tag = 'output window, operand 0']
    %17 = vsyncpa [#allocation6], 0
    %s18 = scalar_lea.sflag [#allocation6], 1
    %19 = vsyncpa %s18, 0
    %20 = vsyncpa [#allocation9], 0
    %s21 = scalar_lea.sflag [#allocation9], 1
    %22 = vsyncpa %s21, 0
    %23 = vsyncpa [#allocation12], 0
    %24 = vsyncpa [#allocation15], 0
    %25 = vsyncpa [#allocation18], 0
    %26 = vsyncpa [#allocation21], 0
    %27 = vsyncpa [#allocation24], 0
    %28 = vsyncpa [#allocation7], 0
    %s29 = scalar_lea.sflag [#allocation7], 1
    %30 = vsyncpa %s29, 0
    loop: start=0, step=1, limit=4
    $region2: #{tpu_custom_call.1} parent=1 // loop_pre_header
      _
    $region3: #{tpu_custom_call.1} parent=1 // loop_header
      %s32 = sphi 0, %s36
      %p33 = scmp.ge.s32.totalorder %s32, 4
      %s42 = sphi 0, %s44
      %s45 = sphi 0, %s42
      %s46 = sphi 0, %s45
      %s62 = sphi 0, %s46
      %s68 = sphi 0, %s70
      %s71 = sphi 0, %s68
      %s72 = sphi 0, %s71
      %s88 = sphi 0, %s72
      %s92 = sphi 0, %s92
      %s94 = sphi 0, %s92
      %s95 = sphi 0, %s94
      %s109 = sphi 0, %s95
      %s113 = sphi 0, %s113
      %s115 = sphi 0, %s113
      %s116 = sphi 0, %s115
      %s130 = sphi 0, %s116
      %s134 = sphi 0, %s134
      %s136 = sphi 0, %s134
      %s137 = sphi 0, %s136
      %s151 = sphi 0, %s137
      %s155 = sphi 0, %s155
      %s157 = sphi 0, %s155
      %s158 = sphi 0, %s157
      %s172 = sphi 0, %s158
      %s176 = sphi 0, %s176
      %s178 = sphi 0, %s176
      %s179 = sphi 0, %s178
      %s193 = sphi 0, %s179
      %s197 = sphi 0, %s197
      %s199 = sphi 0, %s197
      %s200 = sphi 0, %s199
      %s214 = sphi 0, %s200
      %s218 = sphi 0, %s218
      %s220 = sphi 0, %s218
      %s221 = sphi 0, %s220
      %s235 = sphi 0, %s221
      %s239 = sphi 0, %s239
      %s241 = sphi 0, %s239
      %s242 = sphi 0, %s241
      %s256 = sphi 0, %s242
      %s260 = sphi 0, %s260
      %s262 = sphi 0, %s260
      %s263 = sphi 0, %s262
      %s277 = sphi 0, %s263
      %s281 = sphi 0, %s281
      %s283 = sphi 0, %s281
      %s284 = sphi 0, %s283
      %s298 = sphi 0, %s284
      %s304 = sphi 0, %s306
      %s307 = sphi 0, %s304
      %s308 = sphi 0, %s307
      %s324 = sphi 0, %s308
    $region4: #{tpu_custom_call.1} parent=1 // loop_header_branch
      %35 = sbr.rel (%p33) target = $region8
    $region5: #{tpu_custom_call.1} parent=1 // loop_body
      %s37 = ssub.s32 %s32, 1
      %s38 = ssub.s32 %s32, 2
      %s39 = sadd.s32 %s32, 1
      %s40 = ssub.s32 %s32, %s39
      %p41 = scmp.eq.s32.totalorder %s40, 0
      %s43 = sadd.s32 %s42, 1
      %s44 = scalar_select %p41, %s42, %s43
      %p47 = pneg %p41
      %p48 = scmp.eq.s32.totalorder %s32, 1
      %p49 = por %p47, %p48
      %p50 = scmp.ne.s32.totalorder %s42, %s45
      %p51 = scmp.eq.s32.totalorder %s32, 0
      %p52 = por %p50, %p51
      %p53 = scmp.ne.s32.totalorder %s42, %s45
      %p54 = scmp.eq.s32.totalorder %s37, 1
      %p55 = por %p53, %p54
      %p56 = scmp.ne.s32.totalorder %s45, %s46
      %p57 = scmp.eq.s32.totalorder %s37, 0
      %p58 = por %p56, %p57
      %p59 = scmp.ne.s32.totalorder %s45, %s46
      %p60 = scmp.eq.s32.totalorder %s38, 1
      %p61 = por %p59, %p60
      %p63 = scmp.ne.s32.totalorder %s46, %s62
      %p64 = scmp.eq.s32.totalorder %s38, 0
      %p65 = por %p63, %p64
      %s66 = ssub.s32 %s32, %s39
      %p67 = scmp.eq.s32.totalorder %s66, 0
      %s69 = sadd.s32 %s68, 1
      %s70 = scalar_select %p67, %s68, %s69
      %p73 = pneg %p67
      %p74 = scmp.eq.s32.totalorder %s32, 1
      %p75 = por %p73, %p74
      %p76 = scmp.ne.s32.totalorder %s68, %s71
      %p77 = scmp.eq.s32.totalorder %s32, 0
      %p78 = por %p76, %p77
      %p79 = scmp.ne.s32.totalorder %s68, %s71
      %p80 = scmp.eq.s32.totalorder %s37, 1
      %p81 = por %p79, %p80
      %p82 = scmp.ne.s32.totalorder %s71, %s72
      %p83 = scmp.eq.s32.totalorder %s37, 0
      %p84 = por %p82, %p83
      %p85 = scmp.ne.s32.totalorder %s71, %s72
      %p86 = scmp.eq.s32.totalorder %s38, 1
      %p87 = por %p85, %p86
      %p89 = scmp.ne.s32.totalorder %s72, %s88
      %p90 = scmp.eq.s32.totalorder %s38, 0
      %p91 = por %p89, %p90
      %s93 = sadd.s32 %s92, 1
      %p96 = scmp.eq.s32.totalorder %s32, 1
      %p97 = scmp.ne.s32.totalorder %s92, %s94
      %p98 = scmp.eq.s32.totalorder %s32, 0
      %p99 = por %p97, %p98
      %p100 = scmp.ne.s32.totalorder %s92, %s94
      %p101 = scmp.eq.s32.totalorder %s37, 1
      %p102 = por %p100, %p101
      %p103 = scmp.ne.s32.totalorder %s94, %s95
      %p104 = scmp.eq.s32.totalorder %s37, 0
      %p105 = por %p103, %p104
      %p106 = scmp.ne.s32.totalorder %s94, %s95
      %p107 = scmp.eq.s32.totalorder %s38, 1
      %p108 = por %p106, %p107
      %p110 = scmp.ne.s32.totalorder %s95, %s109
      %p111 = scmp.eq.s32.totalorder %s38, 0
      %p112 = por %p110, %p111
      %s114 = sadd.s32 %s113, 1
      %p117 = scmp.eq.s32.totalorder %s32, 1
      %p118 = scmp.ne.s32.totalorder %s113, %s115
      %p119 = scmp.eq.s32.totalorder %s32, 0
      %p120 = por %p118, %p119
      %p121 = scmp.ne.s32.totalorder %s113, %s115
      %p122 = scmp.eq.s32.totalorder %s37, 1
      %p123 = por %p121, %p122
      %p124 = scmp.ne.s32.totalorder %s115, %s116
      %p125 = scmp.eq.s32.totalorder %s37, 0
      %p126 = por %p124, %p125
      %p127 = scmp.ne.s32.totalorder %s115, %s116
      %p128 = scmp.eq.s32.totalorder %s38, 1
      %p129 = por %p127, %p128
      %p131 = scmp.ne.s32.totalorder %s116, %s130
      %p132 = scmp.eq.s32.totalorder %s38, 0
      %p133 = por %p131, %p132
      %s135 = sadd.s32 %s134, 1
      %p138 = scmp.eq.s32.totalorder %s32, 1
      %p139 = scmp.ne.s32.totalorder %s134, %s136
      %p140 = scmp.eq.s32.totalorder %s32, 0
      %p141 = por %p139, %p140
      %p142 = scmp.ne.s32.totalorder %s134, %s136
      %p143 = scmp.eq.s32.totalorder %s37, 1
      %p144 = por %p142, %p143
      %p145 = scmp.ne.s32.totalorder %s136, %s137
      %p146 = scmp.eq.s32.totalorder %s37, 0
      %p147 = por %p145, %p146
      %p148 = scmp.ne.s32.totalorder %s136, %s137
      %p149 = scmp.eq.s32.totalorder %s38, 1
      %p150 = por %p148, %p149
      %p152 = scmp.ne.s32.totalorder %s137, %s151
      %p153 = scmp.eq.s32.totalorder %s38, 0
      %p154 = por %p152, %p153
      %s156 = sadd.s32 %s155, 1
      %p159 = scmp.eq.s32.totalorder %s32, 1
      %p160 = scmp.ne.s32.totalorder %s155, %s157
      %p161 = scmp.eq.s32.totalorder %s32, 0
      %p162 = por %p160, %p161
      %p163 = scmp.ne.s32.totalorder %s155, %s157
      %p164 = scmp.eq.s32.totalorder %s37, 1
      %p165 = por %p163, %p164
      %p166 = scmp.ne.s32.totalorder %s157, %s158
      %p167 = scmp.eq.s32.totalorder %s37, 0
      %p168 = por %p166, %p167
      %p169 = scmp.ne.s32.totalorder %s157, %s158
      %p170 = scmp.eq.s32.totalorder %s38, 1
      %p171 = por %p169, %p170
      %p173 = scmp.ne.s32.totalorder %s158, %s172
      %p174 = scmp.eq.s32.totalorder %s38, 0
      %p175 = por %p173, %p174
      %s177 = sadd.s32 %s176, 1
      %p180 = scmp.eq.s32.totalorder %s32, 1
      %p181 = scmp.ne.s32.totalorder %s176, %s178
      %p182 = scmp.eq.s32.totalorder %s32, 0
      %p183 = por %p181, %p182
      %p184 = scmp.ne.s32.totalorder %s176, %s178
      %p185 = scmp.eq.s32.totalorder %s37, 1
      %p186 = por %p184, %p185
      %p187 = scmp.ne.s32.totalorder %s178, %s179
      %p188 = scmp.eq.s32.totalorder %s37, 0
      %p189 = por %p187, %p188
      %p190 = scmp.ne.s32.totalorder %s178, %s179
      %p191 = scmp.eq.s32.totalorder %s38, 1
      %p192 = por %p190, %p191
      %p194 = scmp.ne.s32.totalorder %s179, %s193
      %p195 = scmp.eq.s32.totalorder %s38, 0
      %p196 = por %p194, %p195
      %s198 = sadd.s32 %s197, 1
      %p201 = scmp.eq.s32.totalorder %s32, 1
      %p202 = scmp.ne.s32.totalorder %s197, %s199
      %p203 = scmp.eq.s32.totalorder %s32, 0
      %p204 = por %p202, %p203
      %p205 = scmp.ne.s32.totalorder %s197, %s199
      %p206 = scmp.eq.s32.totalorder %s37, 1
      %p207 = por %p205, %p206
      %p208 = scmp.ne.s32.totalorder %s199, %s200
      %p209 = scmp.eq.s32.totalorder %s37, 0
      %p210 = por %p208, %p209
      %p211 = scmp.ne.s32.totalorder %s199, %s200
      %p212 = scmp.eq.s32.totalorder %s38, 1
      %p213 = por %p211, %p212
      %p215 = scmp.ne.s32.totalorder %s200, %s214
      %p216 = scmp.eq.s32.totalorder %s38, 0
      %p217 = por %p215, %p216
      %s219 = sadd.s32 %s218, 1
      %p222 = scmp.eq.s32.totalorder %s32, 1
      %p223 = scmp.ne.s32.totalorder %s218, %s220
      %p224 = scmp.eq.s32.totalorder %s32, 0
      %p225 = por %p223, %p224
      %p226 = scmp.ne.s32.totalorder %s218, %s220
      %p227 = scmp.eq.s32.totalorder %s37, 1
      %p228 = por %p226, %p227
      %p229 = scmp.ne.s32.totalorder %s220, %s221
      %p230 = scmp.eq.s32.totalorder %s37, 0
      %p231 = por %p229, %p230
      %p232 = scmp.ne.s32.totalorder %s220, %s221
      %p233 = scmp.eq.s32.totalorder %s38, 1
      %p234 = por %p232, %p233
      %p236 = scmp.ne.s32.totalorder %s221, %s235
      %p237 = scmp.eq.s32.totalorder %s38, 0
      %p238 = por %p236, %p237
      %s240 = sadd.s32 %s239, 1
      %p243 = scmp.eq.s32.totalorder %s32, 1
      %p244 = scmp.ne.s32.totalorder %s239, %s241
      %p245 = scmp.eq.s32.totalorder %s32, 0
      %p246 = por %p244, %p245
      %p247 = scmp.ne.s32.totalorder %s239, %s241
      %p248 = scmp.eq.s32.totalorder %s37, 1
      %p249 = por %p247, %p248
      %p250 = scmp.ne.s32.totalorder %s241, %s242
      %p251 = scmp.eq.s32.totalorder %s37, 0
      %p252 = por %p250, %p251
      %p253 = scmp.ne.s32.totalorder %s241, %s242
      %p254 = scmp.eq.s32.totalorder %s38, 1
      %p255 = por %p253, %p254
      %p257 = scmp.ne.s32.totalorder %s242, %s256
      %p258 = scmp.eq.s32.totalorder %s38, 0
      %p259 = por %p257, %p258
      %s261 = sadd.s32 %s260, 1
      %p264 = scmp.eq.s32.totalorder %s32, 1
      %p265 = scmp.ne.s32.totalorder %s260, %s262
      %p266 = scmp.eq.s32.totalorder %s32, 0
      %p267 = por %p265, %p266
      %p268 = scmp.ne.s32.totalorder %s260, %s262
      %p269 = scmp.eq.s32.totalorder %s37, 1
      %p270 = por %p268, %p269
      %p271 = scmp.ne.s32.totalorder %s262, %s263
      %p272 = scmp.eq.s32.totalorder %s37, 0
      %p273 = por %p271, %p272
      %p274 = scmp.ne.s32.totalorder %s262, %s263
      %p275 = scmp.eq.s32.totalorder %s38, 1
      %p276 = por %p274, %p275
      %p278 = scmp.ne.s32.totalorder %s263, %s277
      %p279 = scmp.eq.s32.totalorder %s38, 0
      %p280 = por %p278, %p279
      %s282 = sadd.s32 %s281, 1
      %p285 = scmp.eq.s32.totalorder %s32, 1
      %p286 = scmp.ne.s32.totalorder %s281, %s283
      %p287 = scmp.eq.s32.totalorder %s32, 0
      %p288 = por %p286, %p287
      %p289 = scmp.ne.s32.totalorder %s281, %s283
      %p290 = scmp.eq.s32.totalorder %s37, 1
      %p291 = por %p289, %p290
      %p292 = scmp.ne.s32.totalorder %s283, %s284
      %p293 = scmp.eq.s32.totalorder %s37, 0
      %p294 = por %p292, %p293
      %p295 = scmp.ne.s32.totalorder %s283, %s284
      %p296 = scmp.eq.s32.totalorder %s38, 1
      %p297 = por %p295, %p296
      %p299 = scmp.ne.s32.totalorder %s284, %s298
      %p300 = scmp.eq.s32.totalorder %s38, 0
      %p301 = por %p299, %p300
      %s302 = ssub.s32 %s32, %s39
      %p303 = scmp.eq.s32.totalorder %s302, 0
      %s305 = sadd.s32 %s304, 1
      %s306 = scalar_select %p303, %s304, %s305
      %p309 = pneg %p303
      %p310 = scmp.eq.s32.totalorder %s32, 1
      %p311 = por %p309, %p310
      %p312 = scmp.ne.s32.totalorder %s304, %s307
      %p313 = scmp.eq.s32.totalorder %s32, 0
      %p314 = por %p312, %p313
      %p315 = scmp.ne.s32.totalorder %s304, %s307
      %p316 = scmp.eq.s32.totalorder %s37, 1
      %p317 = por %p315, %p316
      %p318 = scmp.ne.s32.totalorder %s307, %s308
      %p319 = scmp.eq.s32.totalorder %s37, 0
      %p320 = por %p318, %p319
      %p321 = scmp.ne.s32.totalorder %s307, %s308
      %p322 = scmp.eq.s32.totalorder %s38, 1
      %p323 = por %p321, %p322
      %p325 = scmp.ne.s32.totalorder %s308, %s324
      %p326 = scmp.eq.s32.totalorder %s38, 0
      %p327 = por %p325, %p326
      %p328 = scmp.le.s32.totalorder 1, %s32
      %p329 = scmp.lt.s32.totalorder %s32, 3
      %p330 = pnand %p328, %p329
      %p331 = pneg %p330
      // Predicated region
      $region9: #{tpu_custom_call.1} parent=5 // pred_check
        _
      $region10: #{tpu_custom_call.1} parent=5 // pred_check_branch
        %333 = sbr.rel (%p330) target = $region12
      $region11: #{tpu_custom_call.1} parent=5 // pred_region
        %s334 = ssub.s32 %s32, 1
        // Predicated region
        $region13: #{tpu_custom_call.1} parent=11 // pred_check
          %p335 = pneg %p105
        $region14: #{tpu_custom_call.1} parent=11 // pred_check_branch
          %337 = sbr.rel (%p335) target = $region16
        $region15: #{tpu_custom_call.1} parent=11 // pred_region
          %s339 = ssub.s32 1536, 1536
          %340 = vsyncadd [#allocation9], %s339
          %s341 = sshll.u32 [#allocation10], 4
          %s342 = int_to_ptr.vmem [resolvable:$true] %s341
          %347 = dma.hbm_to_vmem [thread:$0]  %s2, 1536, %s342, [#allocation9], 128, 128, 8
        $region16: #{tpu_custom_call.1} parent=11 // pred_fallthru
          _
        // Predicated region
        $region17: #{tpu_custom_call.1} parent=11 // pred_check
          %p348 = pneg %p126
        $region18: #{tpu_custom_call.1} parent=11 // pred_check_branch
          %350 = sbr.rel (%p348) target = $region20
        $region19: #{tpu_custom_call.1} parent=11 // pred_region
          %s352 = ssub.s32 1536, 1536
          %353 = vsyncadd [#allocation12], %s352
          %s354 = sshll.u32 [#allocation11], 4
          %s355 = int_to_ptr.vmem [resolvable:$true] %s354
          %360 = dma.hbm_to_vmem [thread:$0]  %s3, 1536, %s355, [#allocation12], 128, 128, 8
        $region20: #{tpu_custom_call.1} parent=11 // pred_fallthru
          _
        // Predicated region
        $region21: #{tpu_custom_call.1} parent=11 // pred_check
          %p361 = pneg %p147
        $region22: #{tpu_custom_call.1} parent=11 // pred_check_branch
          %363 = sbr.rel (%p361) target = $region24
        $region23: #{tpu_custom_call.1} parent=11 // pred_region
          %s365 = ssub.s32 256, 256
          %366 = vsyncadd [#allocation12], %s365
          %s367 = sshll.u32 [#allocation13], 4
          %s368 = int_to_ptr.vmem [resolvable:$true] %s367
          %373 = dma.hbm_to_vmem [thread:$0]  %s4, 256, %s368, [#allocation12], 128, 128, 8
        $region24: #{tpu_custom_call.1} parent=11 // pred_fallthru
          _
        // Predicated region
        $region25: #{tpu_custom_call.1} parent=11 // pred_check
          %p374 = pneg %p168
        $region26: #{tpu_custom_call.1} parent=11 // pred_check_branch
          %376 = sbr.rel (%p374) target = $region28
        $region27: #{tpu_custom_call.1} parent=11 // pred_region
          %s378 = ssub.s32 256, 256
          %379 = vsyncadd [#allocation15], %s378
          %s380 = sshll.u32 [#allocation14], 4
          %s381 = int_to_ptr.vmem [resolvable:$true] %s380
          %386 = dma.hbm_to_vmem [thread:$0]  %s5, 256, %s381, [#allocation15], 128, 128, 8
        $region28: #{tpu_custom_call.1} parent=11 // pred_fallthru
          _
        // Predicated region
        $region29: #{tpu_custom_call.1} parent=11 // pred_check
          %p387 = pneg %p189
        $region30: #{tpu_custom_call.1} parent=11 // pred_check_branch
          %389 = sbr.rel (%p387) target = $region32
        $region31: #{tpu_custom_call.1} parent=11 // pred_region
          %s391 = ssub.s32 768, 768
          %392 = vsyncadd [#allocation15], %s391
          %s393 = sshll.u32 [#allocation16], 4
          %s394 = int_to_ptr.vmem [resolvable:$true] %s393
          %399 = dma.hbm_to_vmem [thread:$0]  %s6, 768, %s394, [#allocation15], 128, 128, 8
        $region32: #{tpu_custom_call.1} parent=11 // pred_fallthru
          _
        // Predicated region
        $region33: #{tpu_custom_call.1} parent=11 // pred_check
          %p400 = pneg %p210
        $region34: #{tpu_custom_call.1} parent=11 // pred_check_branch
          %402 = sbr.rel (%p400) target = $region36
        $region35: #{tpu_custom_call.1} parent=11 // pred_region
          %s404 = ssub.s32 768, 768
          %405 = vsyncadd [#allocation18], %s404
          %s406 = sshll.u32 [#allocation17], 4
          %s407 = int_to_ptr.vmem [resolvable:$true] %s406
          %412 = dma.hbm_to_vmem [thread:$0]  %s7, 768, %s407, [#allocation18], 128, 128, 8
        $region36: #{tpu_custom_call.1} parent=11 // pred_fallthru
          _
        // Predicated region
        $region37: #{tpu_custom_call.1} parent=11 // pred_check
          %p413 = pneg %p231
        $region38: #{tpu_custom_call.1} parent=11 // pred_check_branch
          %415 = sbr.rel (%p413) target = $region40
        $region39: #{tpu_custom_call.1} parent=11 // pred_region
          %s417 = ssub.s32 640, 640
          %418 = vsyncadd [#allocation18], %s417
          %s419 = sshll.u32 [#allocation19], 4
          %s420 = int_to_ptr.vmem [resolvable:$true] %s419
          %425 = dma.hbm_to_vmem [thread:$0]  %s8, 640, %s420, [#allocation18], 64, 64, 4
        $region40: #{tpu_custom_call.1} parent=11 // pred_fallthru
          _
        // Predicated region
        $region41: #{tpu_custom_call.1} parent=11 // pred_check
          %p426 = pneg %p252
        $region42: #{tpu_custom_call.1} parent=11 // pred_check_branch
          %428 = sbr.rel (%p426) target = $region44
        $region43: #{tpu_custom_call.1} parent=11 // pred_region
          %s430 = ssub.s32 256, 256
          %431 = vsyncadd [#allocation21], %s430
          %s432 = sshll.u32 [#allocation20], 4
          %s433 = int_to_ptr.vmem [resolvable:$true] %s432
          %438 = dma.hbm_to_vmem [thread:$0]  %s9, 256, %s433, [#allocation21], 128, 128, 8
        $region44: #{tpu_custom_call.1} parent=11 // pred_fallthru
          _
        // Predicated region
        $region45: #{tpu_custom_call.1} parent=11 // pred_check
          %p439 = pneg %p273
        $region46: #{tpu_custom_call.1} parent=11 // pred_check_branch
          %441 = sbr.rel (%p439) target = $region48
        $region47: #{tpu_custom_call.1} parent=11 // pred_region
          %s443 = ssub.s32 128, 128
          %444 = vsyncadd [#allocation21], %s443
          %s445 = sshll.u32 [#allocation22], 4
          %s446 = int_to_ptr.vmem [resolvable:$true] %s445
          %451 = dma.hbm_to_vmem [thread:$0]  %s10, 128, %s446, [#allocation21], 64, 64, 4
        $region48: #{tpu_custom_call.1} parent=11 // pred_fallthru
          _
        // Predicated region
        $region49: #{tpu_custom_call.1} parent=11 // pred_check
          %p452 = pneg %p294
        $region50: #{tpu_custom_call.1} parent=11 // pred_check_branch
          %454 = sbr.rel (%p452) target = $region52
        $region51: #{tpu_custom_call.1} parent=11 // pred_region
          %s456 = ssub.s32 256, 256
          %457 = vsyncadd [#allocation24], %s456
          %s458 = sshll.u32 [#allocation23], 4
          %s459 = int_to_ptr.vmem [resolvable:$true] %s458
          %464 = dma.hbm_to_vmem [thread:$0]  %s11, 256, %s459, [#allocation24], 128, 128, 8
        $region52: #{tpu_custom_call.1} parent=11 // pred_fallthru
          _
      $region12: #{tpu_custom_call.1} parent=5 // pred_fallthru
        _
      %p465 = scmp.lt.s32.totalorder %s32, 2
      // Predicated region
      $region53: #{tpu_custom_call.1} parent=5 // pred_check
        %p466 = pneg %p465
      $region54: #{tpu_custom_call.1} parent=5 // pred_check_branch
        %468 = sbr.rel (%p466) target = $region56
      $region55: #{tpu_custom_call.1} parent=5 // pred_region
        // Predicated region
        $region57: #{tpu_custom_call.1} parent=55 // pred_check
          %p469 = pneg %p52
        $region58: #{tpu_custom_call.1} parent=55 // pred_check_branch
          %471 = sbr.rel (%p469) target = $region60
        $region59: #{tpu_custom_call.1} parent=55 // pred_region
          %s472 = sand.u32 %s42, 1
          %s473 = scalar_lea.sflag [#allocation6], %s472
          %s474 = sand.u32 %s42, 1
          %s475 = smul.addr %s474, 8
          %s476 = scalar_lea.vmem [#allocation5], %s475
          %s478 = ssub.s32 128, 128
          %479 = vsyncadd %s473, %s478
          %s480 = smul.addr %s32, 2
          %s481 = smul.addr %s480, 64
          %s482 = scalar_lea.hbm %s0, %s481
          %s483 = sshll.u32 %s476, 4
          %s484 = int_to_ptr.vmem [resolvable:$true] %s483
          %489 = dma.hbm_to_vmem [thread:$0]  %s482, 128, %s484, %s473, 64, 64, 4
        $region60: #{tpu_custom_call.1} parent=55 // pred_fallthru
          _
        // Predicated region
        $region61: #{tpu_custom_call.1} parent=55 // pred_check
          %p490 = pneg %p78
        $region62: #{tpu_custom_call.1} parent=55 // pred_check_branch
          %492 = sbr.rel (%p490) target = $region64
        $region63: #{tpu_custom_call.1} parent=55 // pred_region
          %s493 = sand.u32 %s32, 1
          %s494 = scalar_lea.sflag [#allocation9], %s493
          %s495 = sand.u32 %s68, 1
          %s496 = smul.addr %s495, 8
          %s497 = scalar_lea.vmem [#allocation8], %s496
          %s499 = ssub.s32 128, 128
          %500 = vsyncadd %s494, %s499
          %s501 = smul.addr %s32, 2
          %s502 = smul.addr %s501, 64
          %s503 = scalar_lea.hbm %s1, %s502
          %s504 = sshll.u32 %s497, 4
          %s505 = int_to_ptr.vmem [resolvable:$true] %s504
          %510 = dma.hbm_to_vmem [thread:$0]  %s503, 128, %s505, %s494, 64, 64, 4
        $region64: #{tpu_custom_call.1} parent=55 // pred_fallthru
          _
      $region56: #{tpu_custom_call.1} parent=5 // pred_fallthru
        _
      %p511 = scmp.le.s32.totalorder 1, %s32
      %p512 = scmp.lt.s32.totalorder %s32, 3
      %p513 = pnand %p511, %p512
      %p514 = pneg %p513
      // Predicated region
      $region65: #{tpu_custom_call.1} parent=5 // pred_check
        _
      $region66: #{tpu_custom_call.1} parent=5 // pred_check_branch
        %516 = sbr.rel (%p513) target = $region68
      $region67: #{tpu_custom_call.1} parent=5 // pred_region
        %s517 = ssub.s32 %s32, 1
        %s518 = sand.u32 %s45, 1
        %s519 = scalar_lea.sflag [#allocation6], %s518
        %s520 = sand.u32 %s45, 1
        %s521 = smul.addr %s520, 8
        %s522 = scalar_lea.vmem [#allocation5], %s521
        // Predicated region
        $region69: #{tpu_custom_call.1} parent=67 // pred_check
          %p523 = pneg %p58
        $region70: #{tpu_custom_call.1} parent=67 // pred_check_branch
          %525 = sbr.rel (%p523) target = $region72
        $region71: #{tpu_custom_call.1} parent=67 // pred_region
          %526 = dma.done %s519, 128
        $region72: #{tpu_custom_call.1} parent=67 // pred_fallthru
          _
        %s527 = sand.u32 %s37, 1
        %s528 = scalar_lea.sflag [#allocation9], %s527
        %s529 = sand.u32 %s71, 1
        %s530 = smul.addr %s529, 8
        %s531 = scalar_lea.vmem [#allocation8], %s530
        // Predicated region
        $region73: #{tpu_custom_call.1} parent=67 // pred_check
          %p532 = pneg %p84
        $region74: #{tpu_custom_call.1} parent=67 // pred_check_branch
          %534 = sbr.rel (%p532) target = $region76
        $region75: #{tpu_custom_call.1} parent=67 // pred_region
          %535 = dma.done %s528, 128
        $region76: #{tpu_custom_call.1} parent=67 // pred_fallthru
          _
        // Predicated region
        $region77: #{tpu_custom_call.1} parent=67 // pred_check
          %p536 = pneg %p105
        $region78: #{tpu_custom_call.1} parent=67 // pred_check_branch
          %538 = sbr.rel (%p536) target = $region80
        $region79: #{tpu_custom_call.1} parent=67 // pred_region
          %539 = dma.done [#allocation9], 1536
        $region80: #{tpu_custom_call.1} parent=67 // pred_fallthru
          _
        // Predicated region
        $region81: #{tpu_custom_call.1} parent=67 // pred_check
          %p540 = pneg %p126
        $region82: #{tpu_custom_call.1} parent=67 // pred_check_branch
          %542 = sbr.rel (%p540) target = $region84
        $region83: #{tpu_custom_call.1} parent=67 // pred_region
          %543 = dma.done [#allocation12], 1536
        $region84: #{tpu_custom_call.1} parent=67 // pred_fallthru
          _
        // Predicated region
        $region85: #{tpu_custom_call.1} parent=67 // pred_check
          %p544 = pneg %p147
        $region86: #{tpu_custom_call.1} parent=67 // pred_check_branch
          %546 = sbr.rel (%p544) target = $region88
        $region87: #{tpu_custom_call.1} parent=67 // pred_region
          %547 = dma.done [#allocation12], 256
        $region88: #{tpu_custom_call.1} parent=67 // pred_fallthru
          _
        // Predicated region
        $region89: #{tpu_custom_call.1} parent=67 // pred_check
          %p548 = pneg %p168
        $region90: #{tpu_custom_call.1} parent=67 // pred_check_branch
          %550 = sbr.rel (%p548) target = $region92
        $region91: #{tpu_custom_call.1} parent=67 // pred_region
          %551 = dma.done [#allocation15], 256
        $region92: #{tpu_custom_call.1} parent=67 // pred_fallthru
          _
        // Predicated region
        $region93: #{tpu_custom_call.1} parent=67 // pred_check
          %p552 = pneg %p189
        $region94: #{tpu_custom_call.1} parent=67 // pred_check_branch
          %554 = sbr.rel (%p552) target = $region96
        $region95: #{tpu_custom_call.1} parent=67 // pred_region
          %555 = dma.done [#allocation15], 768
        $region96: #{tpu_custom_call.1} parent=67 // pred_fallthru
          _
        // Predicated region
        $region97: #{tpu_custom_call.1} parent=67 // pred_check
          %p556 = pneg %p210
        $region98: #{tpu_custom_call.1} parent=67 // pred_check_branch
          %558 = sbr.rel (%p556) target = $region100
        $region99: #{tpu_custom_call.1} parent=67 // pred_region
          %559 = dma.done [#allocation18], 768
        $region100: #{tpu_custom_call.1} parent=67 // pred_fallthru
          _
        // Predicated region
        $region101: #{tpu_custom_call.1} parent=67 // pred_check
          %p560 = pneg %p231
        $region102: #{tpu_custom_call.1} parent=67 // pred_check_branch
          %562 = sbr.rel (%p560) target = $region104
        $region103: #{tpu_custom_call.1} parent=67 // pred_region
          %563 = dma.done [#allocation18], 640
        $region104: #{tpu_custom_call.1} parent=67 // pred_fallthru
          _
        // Predicated region
        $region105: #{tpu_custom_call.1} parent=67 // pred_check
          %p564 = pneg %p252
        $region106: #{tpu_custom_call.1} parent=67 // pred_check_branch
          %566 = sbr.rel (%p564) target = $region108
        $region107: #{tpu_custom_call.1} parent=67 // pred_region
          %567 = dma.done [#allocation21], 256
        $region108: #{tpu_custom_call.1} parent=67 // pred_fallthru
          _
        // Predicated region
        $region109: #{tpu_custom_call.1} parent=67 // pred_check
          %p568 = pneg %p273
        $region110: #{tpu_custom_call.1} parent=67 // pred_check_branch
          %570 = sbr.rel (%p568) target = $region112
        $region111: #{tpu_custom_call.1} parent=67 // pred_region
          %571 = dma.done [#allocation21], 128
        $region112: #{tpu_custom_call.1} parent=67 // pred_fallthru
          _
        // Predicated region
        $region113: #{tpu_custom_call.1} parent=67 // pred_check
          %p572 = pneg %p294
        $region114: #{tpu_custom_call.1} parent=67 // pred_check_branch
          %574 = sbr.rel (%p572) target = $region116
        $region115: #{tpu_custom_call.1} parent=67 // pred_region
          %575 = dma.done [#allocation24], 256
        $region116: #{tpu_custom_call.1} parent=67 // pred_fallthru
          _
        %s576 = sand.u32 %s45, 1
        %s577 = scalar_lea.sflag [#allocation6], %s576
        %s578 = sand.u32 %s45, 1
        %s579 = smul.addr %s578, 8
        %s580 = scalar_lea.vmem [#allocation5], %s579
        %p581 = pneg %p58
        %p582 = pneg %p55
        %s583 = sand.u32 %s37, 1
        %s584 = scalar_lea.sflag [#allocation9], %s583
        %s585 = sand.u32 %s71, 1
        %s586 = smul.addr %s585, 8
        %s587 = scalar_lea.vmem [#allocation8], %s586
        %p588 = pneg %p84
        %p589 = pneg %p81
        %p590 = pneg %p105
        %p591 = pneg %p102
        %p592 = pneg %p126
        %p593 = pneg %p123
        %p594 = pneg %p147
        %p595 = pneg %p144
        %p596 = pneg %p168
        %p597 = pneg %p165
        %p598 = pneg %p189
        %p599 = pneg %p186
        %p600 = pneg %p210
        %p601 = pneg %p207
        %p602 = pneg %p231
        %p603 = pneg %p228
        %p604 = pneg %p252
        %p605 = pneg %p249
        %p606 = pneg %p273
        %p607 = pneg %p270
        %p608 = pneg %p294
        %p609 = pneg %p291
        %p610 = pneg %p320
        %p611 = pneg %p317
        %s612 = sand.u32 %s307, 1
        %s613 = scalar_lea.sflag [#allocation7], %s612
        %s614 = sand.u32 %s307, 1
        %s615 = smul.addr %s614, 16
        %s616 = scalar_lea.vmem [#allocation25], %s615
        %vm618 = vcmask 15360
        %619 = vst.msk [vmem:[#allocation2] sm:$0xff] %vm618, 0
        %620 = vst.msk [vmem:[#allocation2 + $0x10] sm:$0xff] %vm618, 0
        %vm621 = vcmask 31760
        %622 = vst.msk [vmem:[#allocation2 + $0x8] sm:$0xff] %vm621, 0
        %623 = vst.msk [vmem:[#allocation2 + $0x18] sm:$0xff] %vm621, 0
        %vm624 = vcmask 7168
        %625 = vst.msk [vmem:[#allocation4] sm:$0xff] %vm624, 0
        %626 = vst.msk [vmem:[#allocation4 + $0x10] sm:$0xff] %vm624, 0
        %627 = vst.msk [vmem:[#allocation4 + $0x20] sm:$0xff] %vm624, 0
        %628 = vst.msk [vmem:[#allocation4 + $0x30] sm:$0xff] %vm624, 0
        %629 = vst.msk [vmem:[#allocation4 + $0x40] sm:$0xff] %vm624, 0
        %630 = vst.msk [vmem:[#allocation4 + $0x50] sm:$0xff] %vm624, 0
        %vm631 = vcmask 15368
        %632 = vst.msk [vmem:[#allocation4 + $0x8] sm:$0xff] %vm631, 0
        %633 = vst.msk [vmem:[#allocation4 + $0x18] sm:$0xff] %vm631, 0
        %634 = vst.msk [vmem:[#allocation4 + $0x28] sm:$0xff] %vm631, 0
        %635 = vst.msk [vmem:[#allocation4 + $0x38] sm:$0xff] %vm631, 0
        %636 = vst.msk [vmem:[#allocation4 + $0x48] sm:$0xff] %vm631, 0
        %637 = vst.msk [vmem:[#allocation4 + $0x58] sm:$0xff] %vm631, 0
        %v638 = vld [vmem:[%s522] sm:$0xf]
        %v639 = vld [vmem:[%s522 + $0x4] sm:$0xf]
        %v640 = vld [vmem:[%s531] sm:$0xf]
        %v641 = vld [vmem:[%s531 + $0x4] sm:$0xf]
        %v644 = vunpack.c.l.b16 %v638
        %v645 = vunpack.c.l.b16 %v639
        %v646 = vpack.c.b16 %v645, %v644
        %647 = vrot.lane.b32.xlu0 %v646, 2
        %v648 = vpop.permute.xlu0 %647
        %vm650 = vcmask 1047568
        %651 = vst.msk [vmem:[#allocation2] sm:$0xff] %vm650, %v648
        %652 = vst.msk [vmem:[#allocation2 + $0x8] sm:$0xff] %vm618, %v648
        %v655 = vunpack.c.l.b16 %v640
        %v656 = vunpack.c.l.b16 %v641
        %v657 = vpack.c.b16 %v656, %v655
        %658 = vrot.lane.b32.xlu0 %v657, 2
        %v659 = vpop.permute.xlu0 %658
        %661 = vst.msk [vmem:[#allocation2 + $0x10] sm:$0xff] %vm650, %v659
        %662 = vst.msk [vmem:[#allocation2 + $0x18] sm:$0xff] %vm618, %v659
        %v663 = vld [vmem:[#allocation2] sm:$0xff]
        %664 = vst [vmem:[#allocation3] sm:$0xff] %v663
        %v665 = vld [vmem:[#allocation2] sm:$0xff]
        %v666 = vld [vmem:[#allocation2 + $0x8] sm:$0xff]
        %669 = vrot.lane.b32.xlu0 %v665, 127
        %v670 = vpop.permute.xlu0 %669
        %671 = vrot.lane.b32.xlu0 %v666, 127
        %v672 = vpop.permute.xlu0 %671
        %vm673 = vcmask 1039360
        %v674 = vsel %vm673, %v670, %v672
        %676 = vst [vmem:[#allocation3 + $0x8] sm:$0xff] %v674
        %v677 = vld [vmem:[#allocation2] sm:$0xff]
        %v678 = vld [vmem:[#allocation2 + $0x8] sm:$0xff]
        %681 = vrot.lane.b32.xlu0 %v677, 126
        %v682 = vpop.permute.xlu0 %681
        %683 = vrot.lane.b32.xlu0 %v678, 126
        %v684 = vpop.permute.xlu0 %683
        %vm685 = vcmask 1031168
        %v686 = vsel %vm685, %v682, %v684
        %688 = vst [vmem:[#allocation3 + $0x10] sm:$0xff] %v686
        %v689 = vld [vmem:[#allocation2] sm:$0xff]
        %v690 = vld [vmem:[#allocation2 + $0x8] sm:$0xff]
        %693 = vrot.lane.b32.xlu0 %v689, 125
        %v694 = vpop.permute.xlu0 %693
        %695 = vrot.lane.b32.xlu0 %v690, 125
        %v696 = vpop.permute.xlu0 %695
        %vm697 = vcmask 1022976
        %v698 = vsel %vm697, %v694, %v696
        %700 = vst [vmem:[#allocation3 + $0x18] sm:$0xff] %v698
        %v701 = vld [vmem:[#allocation2] sm:$0xff]
        %v702 = vld [vmem:[#allocation2 + $0x8] sm:$0xff]
        %705 = vrot.lane.b32.xlu0 %v701, 124
        %v706 = vpop.permute.xlu0 %705
        %707 = vrot.lane.b32.xlu0 %v702, 124
        %v708 = vpop.permute.xlu0 %707
        %vm709 = vcmask 1014784
        %v710 = vsel %vm709, %v706, %v708
        %712 = vst [vmem:[#allocation3 + $0x20] sm:$0xff] %v710
        %v713 = vld [vmem:[#allocation2 + $0x10] sm:$0xff]
        %714 = vst [vmem:[#allocation3 + $0x28] sm:$0xff] %v713
        %v715 = vld [vmem:[#allocation2 + $0x10] sm:$0xff]
        %v716 = vld [vmem:[#allocation2 + $0x18] sm:$0xff]
        %719 = vrot.lane.b32.xlu0 %v715, 127
        %v720 = vpop.permute.xlu0 %719
        %721 = vrot.lane.b32.xlu0 %v716, 127
        %v722 = vpop.permute.xlu0 %721
        %v723 = vsel %vm673, %v720, %v722
        %725 = vst [vmem:[#allocation3 + $0x30] sm:$0xff] %v723
        %v726 = vld [vmem:[#allocation2 + $0x10] sm:$0xff]
        %v727 = vld [vmem:[#allocation2 + $0x18] sm:$0xff]
        %730 = vrot.lane.b32.xlu0 %v726, 126
        %v731 = vpop.permute.xlu0 %730
        %732 = vrot.lane.b32.xlu0 %v727, 126
        %v733 = vpop.permute.xlu0 %732
        %v734 = vsel %vm685, %v731, %v733
        %736 = vst [vmem:[#allocation3 + $0x38] sm:$0xff] %v734
        %v737 = vld [vmem:[#allocation2 + $0x10] sm:$0xff]
        %v738 = vld [vmem:[#allocation2 + $0x18] sm:$0xff]
        %741 = vrot.lane.b32.xlu0 %v737, 125
        %v742 = vpop.permute.xlu0 %741
        %743 = vrot.lane.b32.xlu0 %v738, 125
        %v744 = vpop.permute.xlu0 %743
        %v745 = vsel %vm697, %v742, %v744
        %747 = vst [vmem:[#allocation3 + $0x40] sm:$0xff] %v745
        %v748 = vld [vmem:[#allocation2 + $0x10] sm:$0xff]
        %v749 = vld [vmem:[#allocation2 + $0x18] sm:$0xff]
        %752 = vrot.lane.b32.xlu0 %v748, 124
        %v753 = vpop.permute.xlu0 %752
        %754 = vrot.lane.b32.xlu0 %v749, 124
        %v755 = vpop.permute.xlu0 %754
        %v756 = vsel %vm709, %v753, %v755
        %758 = vst [vmem:[#allocation3 + $0x48] sm:$0xff] %v756
        %v759 = vld [vmem:[#allocation10] sm:$0xff]
        %v760 = vld [vmem:[#allocation10 + $0x8] sm:$0xff]
        %v761 = vld [vmem:[#allocation10 + $0x10] sm:$0xff]
        %v762 = vld [vmem:[#allocation10 + $0x18] sm:$0xff]
        %v763 = vld [vmem:[#allocation10 + $0x20] sm:$0xff]
        %v764 = vld [vmem:[#allocation10 + $0x28] sm:$0xff]
        %v765 = vld [vmem:[#allocation10 + $0x30] sm:$0xff]
        %v766 = vld [vmem:[#allocation10 + $0x38] sm:$0xff]
        %v767 = vld [vmem:[#allocation10 + $0x40] sm:$0xff]
        %v768 = vld [vmem:[#allocation10 + $0x48] sm:$0xff]
        %v769 = vld [vmem:[#allocation10 + $0x50] sm:$0xff]
        %v770 = vld [vmem:[#allocation10 + $0x58] sm:$0xff]
        %v771 = vld [vmem:[#allocation3] sm:$0xff]
        %v772 = vld [vmem:[#allocation3 + $0x8] sm:$0xff]
        %v773 = vld [vmem:[#allocation3 + $0x10] sm:$0xff]
        %v774 = vld [vmem:[#allocation3 + $0x18] sm:$0xff]
        %v775 = vld [vmem:[#allocation3 + $0x20] sm:$0xff]
        %v776 = vld [vmem:[#allocation3 + $0x28] sm:$0xff]
        %v777 = vld [vmem:[#allocation3 + $0x30] sm:$0xff]
        %v778 = vld [vmem:[#allocation3 + $0x38] sm:$0xff]
        %v779 = vld [vmem:[#allocation3 + $0x40] sm:$0xff]
        %v780 = vld [vmem:[#allocation3 + $0x48] sm:$0xff]
        %v781 = vld [vmem:[#allocation11] sm:$0xff]
        %v782 = vld [vmem:[#allocation11 + $0x8] sm:$0xff]
        %v783 = vld [vmem:[#allocation11 + $0x10] sm:$0xff]
        %v784 = vld [vmem:[#allocation11 + $0x18] sm:$0xff]
        %v785 = vld [vmem:[#allocation11 + $0x20] sm:$0xff]
        %v786 = vld [vmem:[#allocation11 + $0x28] sm:$0xff]
        %v787 = vld [vmem:[#allocation11 + $0x30] sm:$0xff]
        %v788 = vld [vmem:[#allocation11 + $0x38] sm:$0xff]
        %v789 = vld [vmem:[#allocation11 + $0x40] sm:$0xff]
        %v790 = vld [vmem:[#allocation11 + $0x48] sm:$0xff]
        %v791 = vld [vmem:[#allocation11 + $0x50] sm:$0xff]
        %v792 = vld [vmem:[#allocation11 + $0x58] sm:$0xff]
        %794 = vset.pattern.permute.xlu0 0
        %795 = vperm.xlu0 %794, %v781
        %v796 = vpop.permute.xlu0 %795
        %799 = vset.pattern.permute.xlu0 0
        %800 = vperm.xlu0 %799, %v782
        %v801 = vpop.permute.xlu0 %800
        %804 = vset.pattern.permute.xlu0 0
        %805 = vperm.xlu0 %804, %v783
        %v806 = vpop.permute.xlu0 %805
        %809 = vset.pattern.permute.xlu0 0
        %810 = vperm.xlu0 %809, %v784
        %v811 = vpop.permute.xlu0 %810
        %814 = vset.pattern.permute.xlu0 0
        %815 = vperm.xlu0 %814, %v785
        %v816 = vpop.permute.xlu0 %815
        %819 = vset.pattern.permute.xlu0 0
        %820 = vperm.xlu0 %819, %v786
        %v821 = vpop.permute.xlu0 %820
        %824 = vset.pattern.permute.xlu0 0
        %825 = vperm.xlu0 %824, %v787
        %v826 = vpop.permute.xlu0 %825
        %829 = vset.pattern.permute.xlu0 0
        %830 = vperm.xlu0 %829, %v788
        %v831 = vpop.permute.xlu0 %830
        %834 = vset.pattern.permute.xlu0 0
        %835 = vperm.xlu0 %834, %v789
        %v836 = vpop.permute.xlu0 %835
        %839 = vset.pattern.permute.xlu0 0
        %840 = vperm.xlu0 %839, %v790
        %v841 = vpop.permute.xlu0 %840
        %844 = vset.pattern.permute.xlu0 0
        %845 = vperm.xlu0 %844, %v791
        %v846 = vpop.permute.xlu0 %845
        %849 = vset.pattern.permute.xlu0 0
        %850 = vperm.xlu0 %849, %v792
        %v851 = vpop.permute.xlu0 %850
        %v865 = vunpack.c.l.b16 %v759
        %v866 = vunpack.c.h.b16 %v759
        %v867 = vunpack.c.l.b16 %v760
        %v868 = vunpack.c.h.b16 %v760
        %v869 = vunpack.c.l.b16 %v761
        %v870 = vunpack.c.h.b16 %v761
        %v871 = vunpack.c.l.b16 %v762
        %v872 = vunpack.c.h.b16 %v762
        %v873 = vunpack.c.l.b16 %v763
        %v874 = vunpack.c.h.b16 %v763
        %v875 = vunpack.c.l.b16 %v764
        %v876 = vunpack.c.h.b16 %v764
        %v877 = vunpack.c.l.b16 %v765
        %v878 = vunpack.c.h.b16 %v765
        %v879 = vunpack.c.l.b16 %v766
        %v880 = vunpack.c.h.b16 %v766
        %v881 = vunpack.c.l.b16 %v767
        %v882 = vunpack.c.h.b16 %v767
        %v883 = vunpack.c.l.b16 %v768
        %v884 = vunpack.c.h.b16 %v768
        %v885 = vunpack.c.l.b16 %v769
        %v886 = vunpack.c.h.b16 %v769
        %v887 = vunpack.c.l.b16 %v770
        %v888 = vunpack.c.h.b16 %v770
        %v889 = vpack.c.b16 %v867, %v865
        %v890 = vpack.c.b16 %v868, %v866
        %v891 = vpack.c.b16 %v871, %v869
        %v892 = vpack.c.b16 %v872, %v870
        %v893 = vpack.c.b16 %v875, %v873
        %v894 = vpack.c.b16 %v876, %v874
        %v895 = vpack.c.b16 %v879, %v877
        %v896 = vpack.c.b16 %v880, %v878
        %v897 = vpack.c.b16 %v883, %v881
        %v898 = vpack.c.b16 %v884, %v882
        %v899 = vpack.c.b16 %v887, %v885
        %v900 = vpack.c.b16 %v888, %v886
        %vm907 = vcmask 261120
        %v909 = vsel %vm907, %v890, 0
        %v912 = vsel %vm907, %v892, 0
        %v915 = vsel %vm907, %v894, 0
        %v918 = vsel %vm907, %v896, 0
        %v921 = vsel %vm907, %v898, 0
        %v924 = vsel %vm907, %v900, 0
        %926 = vmatprep.subr.bf16.mxu0 0
        %927 = vmatpush1.bf16.msra.mxu0 %v771
        %928 = vmatprep.subr.bf16.mxu0 0
        %929 = vmatpush1.bf16.msra.mxu0 %v772
        %930 = vmatprep.subr.bf16.mxu0 0
        %931 = vmatpush1.bf16.msra.mxu0 %v773
        %932 = vmatprep.subr.bf16.mxu0 0
        %933 = vmatpush1.bf16.msra.mxu0 %v774
        %934 = vmatprep.subr.bf16.mxu0 0
        %935 = vmatpush1.bf16.msra.mxu0 %v775
        %936 = vmatprep.subr.bf16.mxu0 0
        %937 = vmatpush1.bf16.msra.mxu0 %v776
        %938 = vmatprep.subr.bf16.mxu0 0
        %939 = vmatpush1.bf16.msra.mxu0 %v777
        %940 = vmatprep.subr.bf16.mxu0 0
        %941 = vmatpush1.bf16.msra.mxu0 %v778
        %942 = vmatprep.subr.bf16.mxu0 0
        %943 = vmatpush1.bf16.msra.mxu0 %v779
        %944 = vmatprep.subr.bf16.mxu0 0
        %945 = vmatpush1.bf16.msra.mxu0 %v780
        %946 = vmatprep.subr.bf16.mxu0 0
        %947 = vmatpush1.bf16.msra.mxu0 0
        %948 = vmatprep.subr.bf16.mxu0 0
        %949 = vmatpush1.bf16.msra.mxu0 0
        %950 = vmatprep.subr.bf16.mxu0 0
        %951 = vmatpush1.bf16.msra.mxu0 0
        %952 = vmatprep.subr.bf16.mxu0 0
        %953 = vmatpush1.bf16.msra.mxu0 0
        %954 = vmatprep.subr.bf16.mxu0 0
        %955 = vmatpush1.bf16.msra.mxu0 0
        %956 = vmatprep.subr.bf16.mxu0 0
        %957 = vmatpush1.bf16.msra.mxu0 0
        %958 = vmatprep.mubr.bf16.mxu0 %v909
        %959 = vmatmul.mubr.bf16.gmra.mrb[0].mxu0 %v889
        %v960 = vpop.f32.mrb[0].mxu0
        %v961 = vadd.f32 %v796, %v960
        %v962 = vpop.f32.mrb[0].mxu0
        %v963 = vpop.f32.mrb[0].mxu0
        %v964 = vadd.f32 %v801, %v963
        %v965 = vpop.f32.mrb[0].mxu0
        %966 = vmatprep.mubr.bf16.mxu0 %v912
        %967 = vmatmul.mubr.bf16.gmra.mrb[0].mxu0 %v891
        %v968 = vpop.f32.mrb[0].mxu0
        %v969 = vadd.f32 %v806, %v968
        %v970 = vpop.f32.mrb[0].mxu0
        %v971 = vpop.f32.mrb[0].mxu0
        %v972 = vadd.f32 %v811, %v971
        %v973 = vpop.f32.mrb[0].mxu0
        %974 = vmatprep.mubr.bf16.mxu0 %v915
        %975 = vmatmul.mubr.bf16.gmra.mrb[0].mxu0 %v893
        %v976 = vpop.f32.mrb[0].mxu0
        %v977 = vadd.f32 %v816, %v976
        %v978 = vpop.f32.mrb[0].mxu0
        %v979 = vpop.f32.mrb[0].mxu0
        %v980 = vadd.f32 %v821, %v979
        %v981 = vpop.f32.mrb[0].mxu0
        %982 = vmatprep.mubr.bf16.mxu0 %v918
        %983 = vmatmul.mubr.bf16.gmra.mrb[0].mxu0 %v895
        %v984 = vpop.f32.mrb[0].mxu0
        %v985 = vadd.f32 %v826, %v984
        %v986 = vpop.f32.mrb[0].mxu0
        %v987 = vpop.f32.mrb[0].mxu0
        %v988 = vadd.f32 %v831, %v987
        %v989 = vpop.f32.mrb[0].mxu0
        %990 = vmatprep.mubr.bf16.mxu0 %v921
        %991 = vmatmul.mubr.bf16.gmra.mrb[0].mxu0 %v897
        %v992 = vpop.f32.mrb[0].mxu0
        %v993 = vadd.f32 %v836, %v992
        %v994 = vpop.f32.mrb[0].mxu0
        %v995 = vpop.f32.mrb[0].mxu0
        %v996 = vadd.f32 %v841, %v995
        %v997 = vpop.f32.mrb[0].mxu0
        %998 = vmatprep.mubr.bf16.mxu0 %v924
        %999 = vmatmul.mubr.bf16.gmra.mrb[0].mxu0 %v899
        %v1000 = vpop.f32.mrb[0].mxu0
        %v1001 = vadd.f32 %v846, %v1000
        %v1002 = vpop.f32.mrb[0].mxu0
        %v1003 = vpop.f32.mrb[0].mxu0
        %v1004 = vadd.f32 %v851, %v1003
        %v1005 = vpop.f32.mrb[0].mxu0
        %1006 = vdwg.mxu0
        %vm1007 = vcmp.ge.f32.partialorder %v961, 0.0
        %vm1008 = vcmp.ge.f32.partialorder %v964, 0.0
        %vm1009 = vcmp.ge.f32.partialorder %v969, 0.0
        %vm1010 = vcmp.ge.f32.partialorder %v972, 0.0
        %vm1011 = vcmp.ge.f32.partialorder %v977, 0.0
        %vm1012 = vcmp.ge.f32.partialorder %v980, 0.0
        %vm1013 = vcmp.ge.f32.partialorder %v985, 0.0
        %vm1014 = vcmp.ge.f32.partialorder %v988, 0.0
        %vm1015 = vcmp.ge.f32.partialorder %v993, 0.0
        %vm1016 = vcmp.ge.f32.partialorder %v996, 0.0
        %vm1017 = vcmp.ge.f32.partialorder %v1001, 0.0
        %vm1018 = vcmp.ge.f32.partialorder %v1004, 0.0
        %v1019 = vmul.f32 %v961, 0.01
        %v1020 = vmul.f32 %v964, 0.01
        %v1021 = vmul.f32 %v969, 0.01
        %v1022 = vmul.f32 %v972, 0.01
        %v1023 = vmul.f32 %v977, 0.01
        %v1024 = vmul.f32 %v980, 0.01
        %v1025 = vmul.f32 %v985, 0.01
        %v1026 = vmul.f32 %v988, 0.01
        %v1027 = vmul.f32 %v993, 0.01
        %v1028 = vmul.f32 %v996, 0.01
        %v1029 = vmul.f32 %v1001, 0.01
        %v1030 = vmul.f32 %v1004, 0.01
        %v1031 = vsel %vm1007, %v961, %v1019
        %v1032 = vsel %vm1008, %v964, %v1020
        %v1033 = vsel %vm1009, %v969, %v1021
        %v1034 = vsel %vm1010, %v972, %v1022
        %v1035 = vsel %vm1011, %v977, %v1023
        %v1036 = vsel %vm1012, %v980, %v1024
        %v1037 = vsel %vm1013, %v985, %v1025
        %v1038 = vsel %vm1014, %v988, %v1026
        %v1039 = vsel %vm1015, %v993, %v1027
        %v1040 = vsel %vm1016, %v996, %v1028
        %v1041 = vsel %vm1017, %v1001, %v1029
        %v1042 = vsel %vm1018, %v1004, %v1030
        %v1043 = vlaneseq
        %v1044 = vand.u32 %v1043, 127
        %vm1045 = vcmp.lt.s32.totalorder %v1044, 8
        %v1046 = vsel %vm1045, 1, 0
        %vm1047 = vcmp.eq.s32.totalorder %v1046, 1
        %v1048 = vsel %vm1047, %v1031, 0.0
        %v1049 = vsel %vm1047, %v1032, 0.0
        %v1050 = vsel %vm1047, %v1033, 0.0
        %v1051 = vsel %vm1047, %v1034, 0.0
        %v1052 = vsel %vm1047, %v1035, 0.0
        %v1053 = vsel %vm1047, %v1036, 0.0
        %v1054 = vsel %vm1047, %v1037, 0.0
        %v1055 = vsel %vm1047, %v1038, 0.0
        %v1056 = vsel %vm1047, %v1039, 0.0
        %v1057 = vsel %vm1047, %v1040, 0.0
        %v1058 = vsel %vm1047, %v1041, 0.0
        %v1059 = vsel %vm1047, %v1042, 0.0
        %1060 = vadd.xlane.f32.xlu0 %v1048
        %v1061 = vpop.xlane.xlu0 %1060
        %1062 = vadd.xlane.f32.xlu0 %v1049
        %v1063 = vpop.xlane.xlu0 %1062
        %1064 = vadd.xlane.f32.xlu0 %v1050
        %v1065 = vpop.xlane.xlu0 %1064
        %1066 = vadd.xlane.f32.xlu0 %v1051
        %v1067 = vpop.xlane.xlu0 %1066
        %1068 = vadd.xlane.f32.xlu0 %v1052
        %v1069 = vpop.xlane.xlu0 %1068
        %1070 = vadd.xlane.f32.xlu0 %v1053
        %v1071 = vpop.xlane.xlu0 %1070
        %1072 = vadd.xlane.f32.xlu0 %v1054
        %v1073 = vpop.xlane.xlu0 %1072
        %1074 = vadd.xlane.f32.xlu0 %v1055
        %v1075 = vpop.xlane.xlu0 %1074
        %1076 = vadd.xlane.f32.xlu0 %v1056
        %v1077 = vpop.xlane.xlu0 %1076
        %1078 = vadd.xlane.f32.xlu0 %v1057
        %v1079 = vpop.xlane.xlu0 %1078
        %1080 = vadd.xlane.f32.xlu0 %v1058
        %v1081 = vpop.xlane.xlu0 %1080
        %1082 = vadd.xlane.f32.xlu0 %v1059
        %v1083 = vpop.xlane.xlu0 %1082
        %v1084 = vadd.f32 %v1061, %v1073
        %v1085 = vadd.f32 %v1063, %v1075
        %v1086 = vadd.f32 %v1065, %v1077
        %v1087 = vadd.f32 %v1067, %v1079
        %v1088 = vadd.f32 %v1069, %v1081
        %v1089 = vadd.f32 %v1071, %v1083
        %v1090 = vmul.f32 %v1084, 0.0625
        %v1091 = vmul.f32 %v1085, 0.0625
        %v1092 = vmul.f32 %v1086, 0.0625
        %v1093 = vmul.f32 %v1087, 0.0625
        %v1094 = vmul.f32 %v1088, 0.0625
        %v1095 = vmul.f32 %v1089, 0.0625
        %v1096 = vld [vmem:[#allocation13] sm:$0xff]
        %v1097 = vld [vmem:[#allocation13 + $0x8] sm:$0xff]
        %v1098 = vld [vmem:[#allocation14] sm:$0xff]
        %v1099 = vld [vmem:[#allocation14 + $0x8] sm:$0xff]
        %vm1100 = vcmask 392192
        %v1102 = vsel %vm1100, %v1096, 0
        %v1105 = vsel %vm1100, %v1097, 0
        %1107 = vmatprep.subr.mxu0 0.0
        %1108 = vmatpush1.msra.mxu0 %v1090
        %1109 = vmatprep.subr.mxu0 0.0
        %1110 = vmatpush1.msra.mxu0 %v1091
        %1111 = vmatprep.subr.mxu0 0.0
        %1112 = vmatpush1.msra.mxu0 %v1092
        %1113 = vmatprep.subr.mxu0 0.0
        %1114 = vmatpush1.msra.mxu0 %v1093
        %1115 = vmatprep.subr.mxu0 0.0
        %1116 = vmatpush1.msra.mxu0 %v1094
        %1117 = vmatprep.subr.mxu0 0.0
        %1118 = vmatpush1.msra.mxu0 %v1095
        %1119 = vmatprep.subr.mxu0 0.0
        %1120 = vmatpush1.msra.mxu0 0.0
        %1121 = vmatprep.subr.mxu0 0.0
        %1122 = vmatpush1.msra.mxu0 0.0
        %1123 = vmatprep.subr.mxu0 0.0
        %1124 = vmatpush1.msra.mxu0 0.0
        %1125 = vmatprep.subr.mxu0 0.0
        %1126 = vmatpush1.msra.mxu0 0.0
        %1127 = vmatprep.subr.mxu0 0.0
        %1128 = vmatpush1.msra.mxu0 0.0
        %1129 = vmatprep.subr.mxu0 0.0
        %1130 = vmatpush1.msra.mxu0 0.0
        %1131 = vmatprep.subr.mxu0 0.0
        %1132 = vmatpush1.msra.mxu0 0.0
        %1133 = vmatprep.subr.mxu0 0.0
        %1134 = vmatpush1.msra.mxu0 0.0
        %1135 = vmatprep.subr.mxu0 0.0
        %1136 = vmatpush1.msra.mxu0 0.0
        %1137 = vmatprep.subr.mxu0 0.0
        %1138 = vmatpush1.msra.mxu0 0.0
        %1139 = vmatprep.subr.mxu0 0.0
        %1140 = vmatpush1.msra.mxu0 0.0
        %1141 = vmatprep.subr.mxu0 0.0
        %1142 = vmatpush1.msra.mxu0 0.0
        %1143 = vmatprep.subr.mxu0 0.0
        %1144 = vmatpush1.msra.mxu0 0.0
        %1145 = vmatprep.subr.mxu0 0.0
        %1146 = vmatpush1.msra.mxu0 0.0
        %1147 = vmatprep.subr.mxu0 0.0
        %1148 = vmatpush1.msra.mxu0 0.0
        %1149 = vmatprep.subr.mxu0 0.0
        %1150 = vmatpush1.msra.mxu0 0.0
        %1151 = vmatprep.subr.mxu0 0.0
        %1152 = vmatpush1.msra.mxu0 0.0
        %1153 = vmatprep.subr.mxu0 0.0
        %1154 = vmatpush1.msra.mxu0 0.0
        %1155 = vmatprep.subr.mxu0 0.0
        %1156 = vmatpush1.msra.mxu0 0.0
        %1157 = vmatprep.subr.mxu0 0.0
        %1158 = vmatpush1.msra.mxu0 0.0
        %1159 = vmatprep.subr.mxu0 0.0
        %1160 = vmatpush1.msra.mxu0 0.0
        %1161 = vmatprep.subr.mxu0 0.0
        %1162 = vmatpush1.msra.mxu0 0.0
        %1163 = vmatprep.subr.mxu0 0.0
        %1164 = vmatpush1.msra.mxu0 0.0
        %1165 = vmatprep.subr.mxu0 0.0
        %1166 = vmatpush1.msra.mxu0 0.0
        %1167 = vmatprep.subr.mxu0 0.0
        %1168 = vmatpush1.msra.mxu0 0.0
        %1169 = vmatprep.subr.mxu0 0.0
        %1170 = vmatpush1.msra.mxu0 0.0
        %1171 = vmatprep.mubr.f32.mxu0 0.0
        %1172 = vmatmul.mubr.f32.gmra.mrb[0].mxu0 %v1102
        %v1173 = vpop.f32.mrb[0].mxu0
        %v1174 = vadd.f32 %v1098, %v1173
        %v1175 = vpop.f32.mrb[0].mxu0
        %1176 = vmatprep.mubr.f32.mxu0 0.0
        %1177 = vmatmul.mubr.f32.gmra.mrb[0].mxu0 %v1105
        %v1178 = vpop.f32.mrb[0].mxu0
        %v1179 = vadd.f32 %v1099, %v1178
        %v1180 = vpop.f32.mrb[0].mxu0
        %1181 = vdwg.mxu0
        %vm1182 = vcmp.ge.f32.partialorder %v1174, 0.0
        %vm1183 = vcmp.ge.f32.partialorder %v1179, 0.0
        %v1184 = vmul.f32 %v1174, 0.01
        %v1185 = vmul.f32 %v1179, 0.01
        %v1186 = vsel %vm1182, %v1174, %v1184
        %v1187 = vsel %vm1183, %v1179, %v1185
        %v1188 = vld [vmem:[#allocation16] sm:$0xff]
        %v1189 = vld [vmem:[#allocation16 + $0x8] sm:$0xff]
        %v1190 = vld [vmem:[#allocation16 + $0x10] sm:$0xff]
        %v1191 = vld [vmem:[#allocation16 + $0x18] sm:$0xff]
        %v1192 = vld [vmem:[#allocation16 + $0x20] sm:$0xff]
        %v1193 = vld [vmem:[#allocation16 + $0x28] sm:$0xff]
        %v1194 = vld [vmem:[#allocation17] sm:$0xff]
        %v1195 = vld [vmem:[#allocation17 + $0x8] sm:$0xff]
        %v1196 = vld [vmem:[#allocation17 + $0x10] sm:$0xff]
        %v1197 = vld [vmem:[#allocation17 + $0x18] sm:$0xff]
        %v1198 = vld [vmem:[#allocation17 + $0x20] sm:$0xff]
        %v1199 = vld [vmem:[#allocation17 + $0x28] sm:$0xff]
        %vm1200 = vcmask 130048
        %v1202 = vsel %vm1200, %v1188, 0
        %v1205 = vsel %vm1200, %v1189, 0
        %v1208 = vsel %vm1200, %v1190, 0
        %v1211 = vsel %vm1200, %v1191, 0
        %v1214 = vsel %vm1200, %v1192, 0
        %v1217 = vsel %vm1200, %v1193, 0
        %1219 = vmatprep.subr.mxu0 0.0
        %1220 = vmatpush1.msra.mxu0 %v1186
        %1221 = vmatprep.subr.mxu0 0.0
        %1222 = vmatpush1.msra.mxu0 %v1187
        %1223 = vmatprep.subr.mxu0 0.0
        %1224 = vmatpush1.msra.mxu0 0.0
        %1225 = vmatprep.subr.mxu0 0.0
        %1226 = vmatpush1.msra.mxu0 0.0
        %1227 = vmatprep.subr.mxu0 0.0
        %1228 = vmatpush1.msra.mxu0 0.0
        %1229 = vmatprep.subr.mxu0 0.0
        %1230 = vmatpush1.msra.mxu0 0.0
        %1231 = vmatprep.subr.mxu0 0.0
        %1232 = vmatpush1.msra.mxu0 0.0
        %1233 = vmatprep.subr.mxu0 0.0
        %1234 = vmatpush1.msra.mxu0 0.0
        %1235 = vmatprep.subr.mxu0 0.0
        %1236 = vmatpush1.msra.mxu0 0.0
        %1237 = vmatprep.subr.mxu0 0.0
        %1238 = vmatpush1.msra.mxu0 0.0
        %1239 = vmatprep.subr.mxu0 0.0
        %1240 = vmatpush1.msra.mxu0 0.0
        %1241 = vmatprep.subr.mxu0 0.0
        %1242 = vmatpush1.msra.mxu0 0.0
        %1243 = vmatprep.subr.mxu0 0.0
        %1244 = vmatpush1.msra.mxu0 0.0
        %1245 = vmatprep.subr.mxu0 0.0
        %1246 = vmatpush1.msra.mxu0 0.0
        %1247 = vmatprep.subr.mxu0 0.0
        %1248 = vmatpush1.msra.mxu0 0.0
        %1249 = vmatprep.subr.mxu0 0.0
        %1250 = vmatpush1.msra.mxu0 0.0
        %1251 = vmatprep.subr.mxu0 0.0
        %1252 = vmatpush1.msra.mxu0 0.0
        %1253 = vmatprep.subr.mxu0 0.0
        %1254 = vmatpush1.msra.mxu0 0.0
        %1255 = vmatprep.subr.mxu0 0.0
        %1256 = vmatpush1.msra.mxu0 0.0
        %1257 = vmatprep.subr.mxu0 0.0
        %1258 = vmatpush1.msra.mxu0 0.0
        %1259 = vmatprep.subr.mxu0 0.0
        %1260 = vmatpush1.msra.mxu0 0.0
        %1261 = vmatprep.subr.mxu0 0.0
        %1262 = vmatpush1.msra.mxu0 0.0
        %1263 = vmatprep.subr.mxu0 0.0
        %1264 = vmatpush1.msra.mxu0 0.0
        %1265 = vmatprep.subr.mxu0 0.0
        %1266 = vmatpush1.msra.mxu0 0.0
        %1267 = vmatprep.subr.mxu0 0.0
        %1268 = vmatpush1.msra.mxu0 0.0
        %1269 = vmatprep.subr.mxu0 0.0
        %1270 = vmatpush1.msra.mxu0 0.0
        %1271 = vmatprep.subr.mxu0 0.0
        %1272 = vmatpush1.msra.mxu0 0.0
        %1273 = vmatprep.subr.mxu0 0.0
        %1274 = vmatpush1.msra.mxu0 0.0
        %1275 = vmatprep.subr.mxu0 0.0
        %1276 = vmatpush1.msra.mxu0 0.0
        %1277 = vmatprep.subr.mxu0 0.0
        %1278 = vmatpush1.msra.mxu0 0.0
        %1279 = vmatprep.subr.mxu0 0.0
        %1280 = vmatpush1.msra.mxu0 0.0
        %1281 = vmatprep.subr.mxu0 0.0
        %1282 = vmatpush1.msra.mxu0 0.0
        %1283 = vmatprep.mubr.f32.mxu0 0.0
        %1284 = vmatmul.mubr.f32.gmra.mrb[0].mxu0 %v1202
        %v1285 = vpop.f32.mrb[0].mxu0
        %v1286 = vadd.f32 %v1194, %v1285
        %v1287 = vpop.f32.mrb[0].mxu0
        %1288 = vmatprep.mubr.f32.mxu0 0.0
        %1289 = vmatmul.mubr.f32.gmra.mrb[0].mxu0 %v1205
        %v1290 = vpop.f32.mrb[0].mxu0
        %v1291 = vadd.f32 %v1195, %v1290
        %v1292 = vpop.f32.mrb[0].mxu0
        %1293 = vmatprep.mubr.f32.mxu0 0.0
        %1294 = vmatmul.mubr.f32.gmra.mrb[0].mxu0 %v1208
        %v1295 = vpop.f32.mrb[0].mxu0
        %v1296 = vadd.f32 %v1196, %v1295
        %v1297 = vpop.f32.mrb[0].mxu0
        %1298 = vmatprep.mubr.f32.mxu0 0.0
        %1299 = vmatmul.mubr.f32.gmra.mrb[0].mxu0 %v1211
        %v1300 = vpop.f32.mrb[0].mxu0
        %v1301 = vadd.f32 %v1197, %v1300
        %v1302 = vpop.f32.mrb[0].mxu0
        %1303 = vmatprep.mubr.f32.mxu0 0.0
        %1304 = vmatmul.mubr.f32.gmra.mrb[0].mxu0 %v1214
        %v1305 = vpop.f32.mrb[0].mxu0
        %v1306 = vadd.f32 %v1198, %v1305
        %v1307 = vpop.f32.mrb[0].mxu0
        %1308 = vmatprep.mubr.f32.mxu0 0.0
        %1309 = vmatmul.mubr.f32.gmra.mrb[0].mxu0 %v1217
        %v1310 = vpop.f32.mrb[0].mxu0
        %v1311 = vadd.f32 %v1199, %v1310
        %v1312 = vpop.f32.mrb[0].mxu0
        %1313 = vdwg.mxu0
        %vm1314 = vcmp.ge.f32.partialorder %v1286, 0.0
        %vm1315 = vcmp.ge.f32.partialorder %v1291, 0.0
        %vm1316 = vcmp.ge.f32.partialorder %v1296, 0.0
        %vm1317 = vcmp.ge.f32.partialorder %v1301, 0.0
        %vm1318 = vcmp.ge.f32.partialorder %v1306, 0.0
        %vm1319 = vcmp.ge.f32.partialorder %v1311, 0.0
        %v1320 = vmul.f32 %v1286, 0.01
        %v1321 = vmul.f32 %v1291, 0.01
        %v1322 = vmul.f32 %v1296, 0.01
        %v1323 = vmul.f32 %v1301, 0.01
        %v1324 = vmul.f32 %v1306, 0.01
        %v1325 = vmul.f32 %v1311, 0.01
        %v1326 = vsel %vm1314, %v1286, %v1320
        %v1327 = vsel %vm1315, %v1291, %v1321
        %v1328 = vsel %vm1316, %v1296, %v1322
        %v1329 = vsel %vm1317, %v1301, %v1323
        %v1330 = vsel %vm1318, %v1306, %v1324
        %v1331 = vsel %vm1319, %v1311, %v1325
        %v1332 = vxor.u32 %v1326, 2147483648
        %v1333 = vxor.u32 %v1327, 2147483648
        %v1334 = vxor.u32 %v1328, 2147483648
        %v1335 = vxor.u32 %v1329, 2147483648
        %v1336 = vxor.u32 %v1330, 2147483648
        %v1337 = vxor.u32 %v1331, 2147483648
        %v1338 = vmul.f32 %v1332, 1.442695
        %v1339 = vpow.pop %v1338
        %v1340 = vmul.f32 %v1333, 1.442695
        %v1341 = vpow.pop %v1340
        %v1342 = vmul.f32 %v1334, 1.442695
        %v1343 = vpow.pop %v1342
        %v1344 = vmul.f32 %v1335, 1.442695
        %v1345 = vpow.pop %v1344
        %v1346 = vmul.f32 %v1336, 1.442695
        %v1347 = vpow.pop %v1346
        %v1348 = vmul.f32 %v1337, 1.442695
        %v1349 = vpow.pop %v1348
        %v1350 = vadd.f32 %v1339, 1.0
        %v1351 = vadd.f32 %v1341, 1.0
        %v1352 = vadd.f32 %v1343, 1.0
        %v1353 = vadd.f32 %v1345, 1.0
        %v1354 = vadd.f32 %v1347, 1.0
        %v1355 = vadd.f32 %v1349, 1.0
        %v1356 = vrcp.pop %v1350
        %v1357 = vmul.f32 1.0, %v1356
        %v1358 = vrcp.pop %v1351
        %v1359 = vmul.f32 1.0, %v1358
        %v1360 = vrcp.pop %v1352
        %v1361 = vmul.f32 1.0, %v1360
        %v1362 = vrcp.pop %v1353
        %v1363 = vmul.f32 1.0, %v1362
        %v1364 = vrcp.pop %v1354
        %v1365 = vmul.f32 1.0, %v1364
        %v1366 = vrcp.pop %v1355
        %v1367 = vmul.f32 1.0, %v1366
        %1369 = vset.pattern.permute.xlu0 0
        %1370 = vperm.xlu0 %1369, %v1357
        %v1371 = vpop.permute.xlu0 %1370
        %1374 = vset.pattern.permute.xlu0 0
        %1375 = vperm.xlu0 %1374, %v1359
        %v1376 = vpop.permute.xlu0 %1375
        %1379 = vset.pattern.permute.xlu0 0
        %1380 = vperm.xlu0 %1379, %v1361
        %v1381 = vpop.permute.xlu0 %1380
        %1384 = vset.pattern.permute.xlu0 0
        %1385 = vperm.xlu0 %1384, %v1363
        %v1386 = vpop.permute.xlu0 %1385
        %1389 = vset.pattern.permute.xlu0 0
        %1390 = vperm.xlu0 %1389, %v1365
        %v1391 = vpop.permute.xlu0 %1390
        %1394 = vset.pattern.permute.xlu0 0
        %1395 = vperm.xlu0 %1394, %v1367
        %v1396 = vpop.permute.xlu0 %1395
        %v1398 = vmul.f32 %v1048, %v1371
        %v1399 = vmul.f32 %v1049, %v1376
        %v1400 = vmul.f32 %v1050, %v1381
        %v1401 = vmul.f32 %v1051, %v1386
        %v1402 = vmul.f32 %v1052, %v1391
        %v1403 = vmul.f32 %v1053, %v1396
        %v1404 = vpack.c.bf16 %v1399, %v1398
        %v1405 = vpack.c.bf16 %v1401, %v1400
        %v1406 = vpack.c.bf16 %v1403, %v1402
        %1410 = vrot.lane.b32.xlu0 %v1404, 1
        %v1411 = vpop.permute.xlu0 %1410
        %1412 = vrot.lane.b32.xlu0 %v1405, 1
        %v1413 = vpop.permute.xlu0 %1412
        %1414 = vrot.lane.b32.xlu0 %v1406, 1
        %v1415 = vpop.permute.xlu0 %1414
        %vm1419 = vcmask 1047560
        %1420 = vst.msk [vmem:[#allocation4] sm:$0xff] %vm1419, %v1411
        %1421 = vst.msk [vmem:[#allocation4 + $0x8] sm:$0xff] %vm624, %v1411
        %1422 = vst.msk [vmem:[#allocation4 + $0x10] sm:$0xff] %vm1419, %v1413
        %1423 = vst.msk [vmem:[#allocation4 + $0x18] sm:$0xff] %vm624, %v1413
        %1424 = vst.msk [vmem:[#allocation4 + $0x20] sm:$0xff] %vm1419, %v1415
        %1425 = vst.msk [vmem:[#allocation4 + $0x28] sm:$0xff] %vm624, %v1415
        %v1426 = vmul.f32 %v1054, %v1371
        %v1427 = vmul.f32 %v1055, %v1376
        %v1428 = vmul.f32 %v1056, %v1381
        %v1429 = vmul.f32 %v1057, %v1386
        %v1430 = vmul.f32 %v1058, %v1391
        %v1431 = vmul.f32 %v1059, %v1396
        %v1432 = vpack.c.bf16 %v1427, %v1426
        %v1433 = vpack.c.bf16 %v1429, %v1428
        %v1434 = vpack.c.bf16 %v1431, %v1430
        %1438 = vrot.lane.b32.xlu0 %v1432, 1
        %v1439 = vpop.permute.xlu0 %1438
        %1440 = vrot.lane.b32.xlu0 %v1433, 1
        %v1441 = vpop.permute.xlu0 %1440
        %1442 = vrot.lane.b32.xlu0 %v1434, 1
        %v1443 = vpop.permute.xlu0 %1442
        %1447 = vst.msk [vmem:[#allocation4 + $0x30] sm:$0xff] %vm1419, %v1439
        %1448 = vst.msk [vmem:[#allocation4 + $0x38] sm:$0xff] %vm624, %v1439
        %1449 = vst.msk [vmem:[#allocation4 + $0x40] sm:$0xff] %vm1419, %v1441
        %1450 = vst.msk [vmem:[#allocation4 + $0x48] sm:$0xff] %vm624, %v1441
        %1451 = vst.msk [vmem:[#allocation4 + $0x50] sm:$0xff] %vm1419, %v1443
        %1452 = vst.msk [vmem:[#allocation4 + $0x58] sm:$0xff] %vm624, %v1443
        %v1453 = vld [vmem:[#allocation19] sm:$0xf]
        %v1454 = vld [vmem:[#allocation19 + $0x4] sm:$0xf]
        %v1455 = vld [vmem:[#allocation4] sm:$0xff]
        %v1456 = vld [vmem:[#allocation4 + $0x10] sm:$0xff]
        %v1457 = vld [vmem:[#allocation4 + $0x20] sm:$0xff]
        %s1458 = scalar_lea.vmem [#allocation19], 8
        %v1459 = vld [vmem:[%s1458] sm:$0xf]
        %v1460 = vld [vmem:[%s1458 + $0x4] sm:$0xf]
        %v1461 = vld [vmem:[#allocation4 + $0x30] sm:$0xff]
        %v1462 = vld [vmem:[#allocation4 + $0x40] sm:$0xff]
        %v1463 = vld [vmem:[#allocation4 + $0x50] sm:$0xff]
        %v1466 = vunpack.c.l.b16 %v1459
        %v1467 = vunpack.c.l.b16 %v1460
        %v1468 = vpack.c.b16 %v1467, %v1466
        %v1470 = vsel %vm1100, %v1468, 0
        %1472 = vmatprep.subr.bf16.mxu0 0
        %1473 = vmatpush1.bf16.msra.mxu0 %v1461
        %1474 = vmatprep.subr.bf16.mxu0 0
        %1475 = vmatpush1.bf16.msra.mxu0 %v1462
        %1476 = vmatprep.subr.bf16.mxu0 0
        %1477 = vmatpush1.bf16.msra.mxu0 %v1463
        %1478 = vmatprep.subr.bf16.mxu0 0
        %1479 = vmatpush1.bf16.msra.mxu0 0
        %1480 = vmatprep.subr.bf16.mxu0 0
        %1481 = vmatpush1.bf16.msra.mxu0 0
        %1482 = vmatprep.subr.bf16.mxu0 0
        %1483 = vmatpush1.bf16.msra.mxu0 0
        %1484 = vmatprep.subr.bf16.mxu0 0
        %1485 = vmatpush1.bf16.msra.mxu0 0
        %1486 = vmatprep.subr.bf16.mxu0 0
        %1487 = vmatpush1.bf16.msra.mxu0 0
        %1488 = vmatprep.subr.bf16.mxu0 0
        %1489 = vmatpush1.bf16.msra.mxu0 0
        %1490 = vmatprep.subr.bf16.mxu0 0
        %1491 = vmatpush1.bf16.msra.mxu0 0
        %1492 = vmatprep.subr.bf16.mxu0 0
        %1493 = vmatpush1.bf16.msra.mxu0 0
        %1494 = vmatprep.subr.bf16.mxu0 0
        %1495 = vmatpush1.bf16.msra.mxu0 0
        %1496 = vmatprep.subr.bf16.mxu0 0
        %1497 = vmatpush1.bf16.msra.mxu0 0
        %1498 = vmatprep.subr.bf16.mxu0 0
        %1499 = vmatpush1.bf16.msra.mxu0 0
        %1500 = vmatprep.subr.bf16.mxu0 0
        %1501 = vmatpush1.bf16.msra.mxu0 0
        %1502 = vmatprep.subr.bf16.mxu0 0
        %1503 = vmatpush1.bf16.msra.mxu0 0
        %1504 = vmatprep.mubr.bf16.mxu0 0
        %1505 = vmatmul.mubr.bf16.gmra.mrb[0].mxu0 %v1470
        %v1506 = vpop.f32.mrb[0].mxu0
        %v1507 = vadd.f32 0.0, %v1506
        %v1508 = vpop.f32.mrb[0].mxu0
        %v1509 = vpop.f32.mrb[0].mxu0
        %v1510 = vadd.f32 0.0, %v1509
        %v1511 = vpop.f32.mrb[0].mxu0
        %1512 = vdwg.mxu0
        %v1515 = vunpack.c.l.b16 %v1453
        %v1516 = vunpack.c.l.b16 %v1454
        %v1517 = vpack.c.b16 %v1516, %v1515
        %v1519 = vsel %vm1100, %v1517, 0
        %1521 = vmatprep.subr.bf16.mxu0 0
        %1522 = vmatpush1.bf16.msra.mxu0 %v1455
        %1523 = vmatprep.subr.bf16.mxu0 0
        %1524 = vmatpush1.bf16.msra.mxu0 %v1456
        %1525 = vmatprep.subr.bf16.mxu0 0
        %1526 = vmatpush1.bf16.msra.mxu0 %v1457
        %1527 = vmatprep.subr.bf16.mxu0 0
        %1528 = vmatpush1.bf16.msra.mxu0 0
        %1529 = vmatprep.subr.bf16.mxu0 0
        %1530 = vmatpush1.bf16.msra.mxu0 0
        %1531 = vmatprep.subr.bf16.mxu0 0
        %1532 = vmatpush1.bf16.msra.mxu0 0
        %1533 = vmatprep.subr.bf16.mxu0 0
        %1534 = vmatpush1.bf16.msra.mxu0 0
        %1535 = vmatprep.subr.bf16.mxu0 0
        %1536 = vmatpush1.bf16.msra.mxu0 0
        %1537 = vmatprep.subr.bf16.mxu0 0
        %1538 = vmatpush1.bf16.msra.mxu0 0
        %1539 = vmatprep.subr.bf16.mxu0 0
        %1540 = vmatpush1.bf16.msra.mxu0 0
        %1541 = vmatprep.subr.bf16.mxu0 0
        %1542 = vmatpush1.bf16.msra.mxu0 0
        %1543 = vmatprep.subr.bf16.mxu0 0
        %1544 = vmatpush1.bf16.msra.mxu0 0
        %1545 = vmatprep.subr.bf16.mxu0 0
        %1546 = vmatpush1.bf16.msra.mxu0 0
        %1547 = vmatprep.subr.bf16.mxu0 0
        %1548 = vmatpush1.bf16.msra.mxu0 0
        %1549 = vmatprep.subr.bf16.mxu0 0
        %1550 = vmatpush1.bf16.msra.mxu0 0
        %1551 = vmatprep.subr.bf16.mxu0 0
        %1552 = vmatpush1.bf16.msra.mxu0 0
        %1553 = vmatprep.mubr.bf16.mxu0 0
        %1554 = vmatmul.mubr.bf16.gmra.mrb[0].mxu0 %v1519
        %v1555 = vpop.f32.mrb[0].mxu0
        %v1556 = vadd.f32 %v1507, %v1555
        %v1557 = vpop.f32.mrb[0].mxu0
        %v1558 = vpop.f32.mrb[0].mxu0
        %v1559 = vadd.f32 %v1510, %v1558
        %v1560 = vpop.f32.mrb[0].mxu0
        %1561 = vdwg.mxu0
        %s1562 = scalar_lea.vmem [#allocation19], 16
        %v1563 = vld [vmem:[%s1562] sm:$0xf]
        %v1564 = vld [vmem:[%s1562 + $0x4] sm:$0xf]
        %v1565 = vld [vmem:[#allocation4] sm:$0xff]
        %v1566 = vld [vmem:[#allocation4 + $0x8] sm:$0xff]
        %v1567 = vld [vmem:[#allocation4 + $0x10] sm:$0xff]
        %v1568 = vld [vmem:[#allocation4 + $0x18] sm:$0xff]
        %v1569 = vld [vmem:[#allocation4 + $0x20] sm:$0xff]
        %v1570 = vld [vmem:[#allocation4 + $0x28] sm:$0xff]
        %v1573 = vunpack.c.l.b16 %v1563
        %v1574 = vunpack.c.l.b16 %v1564
        %v1575 = vpack.c.b16 %v1574, %v1573
        %1582 = vrot.lane.b32.xlu0 %v1565, 127
        %v1583 = vpop.permute.xlu0 %1582
        %1584 = vrot.lane.b32.xlu0 %v1566, 127
        %v1585 = vpop.permute.xlu0 %1584
        %1586 = vrot.lane.b32.xlu0 %v1567, 127
        %v1587 = vpop.permute.xlu0 %1586
        %1588 = vrot.lane.b32.xlu0 %v1568, 127
        %v1589 = vpop.permute.xlu0 %1588
        %1590 = vrot.lane.b32.xlu0 %v1569, 127
        %v1591 = vpop.permute.xlu0 %1590
        %1592 = vrot.lane.b32.xlu0 %v1570, 127
        %v1593 = vpop.permute.xlu0 %1592
        %v1594 = vsel %vm673, %v1583, %v1585
        %v1595 = vsel %vm673, %v1587, %v1589
        %v1596 = vsel %vm673, %v1591, %v1593
        %v1601 = vsel %vm1100, %v1575, 0
        %1603 = vmatprep.subr.bf16.mxu0 0
        %1604 = vmatpush1.bf16.msra.mxu0 %v1594
        %1605 = vmatprep.subr.bf16.mxu0 0
        %1606 = vmatpush1.bf16.msra.mxu0 %v1595
        %1607 = vmatprep.subr.bf16.mxu0 0
        %1608 = vmatpush1.bf16.msra.mxu0 %v1596
        %1609 = vmatprep.subr.bf16.mxu0 0
        %1610 = vmatpush1.bf16.msra.mxu0 0
        %1611 = vmatprep.subr.bf16.mxu0 0
        %1612 = vmatpush1.bf16.msra.mxu0 0
        %1613 = vmatprep.subr.bf16.mxu0 0
        %1614 = vmatpush1.bf16.msra.mxu0 0
        %1615 = vmatprep.subr.bf16.mxu0 0
        %1616 = vmatpush1.bf16.msra.mxu0 0
        %1617 = vmatprep.subr.bf16.mxu0 0
        %1618 = vmatpush1.bf16.msra.mxu0 0
        %1619 = vmatprep.subr.bf16.mxu0 0
        %1620 = vmatpush1.bf16.msra.mxu0 0
        %1621 = vmatprep.subr.bf16.mxu0 0
        %1622 = vmatpush1.bf16.msra.mxu0 0
        %1623 = vmatprep.subr.bf16.mxu0 0
        %1624 = vmatpush1.bf16.msra.mxu0 0
        %1625 = vmatprep.subr.bf16.mxu0 0
        %1626 = vmatpush1.bf16.msra.mxu0 0
        %1627 = vmatprep.subr.bf16.mxu0 0
        %1628 = vmatpush1.bf16.msra.mxu0 0
        %1629 = vmatprep.subr.bf16.mxu0 0
        %1630 = vmatpush1.bf16.msra.mxu0 0
        %1631 = vmatprep.subr.bf16.mxu0 0
        %1632 = vmatpush1.bf16.msra.mxu0 0
        %1633 = vmatprep.subr.bf16.mxu0 0
        %1634 = vmatpush1.bf16.msra.mxu0 0
        %1635 = vmatprep.mubr.bf16.mxu0 0
        %1636 = vmatmul.mubr.bf16.gmra.mrb[0].mxu0 %v1601
        %v1637 = vpop.f32.mrb[0].mxu0
        %v1638 = vadd.f32 0.0, %v1637
        %v1639 = vpop.f32.mrb[0].mxu0
        %v1640 = vpop.f32.mrb[0].mxu0
        %v1641 = vadd.f32 0.0, %v1640
        %v1642 = vpop.f32.mrb[0].mxu0
        %1643 = vdwg.mxu0
        %v1644 = vadd.f32 %v1556, %v1638
        %v1645 = vadd.f32 %v1559, %v1641
        %s1646 = scalar_lea.vmem [#allocation19], 24
        %v1647 = vld [vmem:[%s1646] sm:$0xf]
        %v1648 = vld [vmem:[%s1646 + $0x4] sm:$0xf]
        %v1649 = vld [vmem:[#allocation4 + $0x30] sm:$0xff]
        %v1650 = vld [vmem:[#allocation4 + $0x38] sm:$0xff]
        %v1651 = vld [vmem:[#allocation4 + $0x40] sm:$0xff]
        %v1652 = vld [vmem:[#allocation4 + $0x48] sm:$0xff]
        %v1653 = vld [vmem:[#allocation4 + $0x50] sm:$0xff]
        %v1654 = vld [vmem:[#allocation4 + $0x58] sm:$0xff]
        %v1657 = vunpack.c.l.b16 %v1647
        %v1658 = vunpack.c.l.b16 %v1648
        %v1659 = vpack.c.b16 %v1658, %v1657
        %1666 = vrot.lane.b32.xlu0 %v1649, 127
        %v1667 = vpop.permute.xlu0 %1666
        %1668 = vrot.lane.b32.xlu0 %v1650, 127
        %v1669 = vpop.permute.xlu0 %1668
        %1670 = vrot.lane.b32.xlu0 %v1651, 127
        %v1671 = vpop.permute.xlu0 %1670
        %1672 = vrot.lane.b32.xlu0 %v1652, 127
        %v1673 = vpop.permute.xlu0 %1672
        %1674 = vrot.lane.b32.xlu0 %v1653, 127
        %v1675 = vpop.permute.xlu0 %1674
        %1676 = vrot.lane.b32.xlu0 %v1654, 127
        %v1677 = vpop.permute.xlu0 %1676
        %v1678 = vsel %vm673, %v1667, %v1669
        %v1679 = vsel %vm673, %v1671, %v1673
        %v1680 = vsel %vm673, %v1675, %v1677
        %v1685 = vsel %vm1100, %v1659, 0
        %1687 = vmatprep.subr.bf16.mxu0 0
        %1688 = vmatpush1.bf16.msra.mxu0 %v1678
        %1689 = vmatprep.subr.bf16.mxu0 0
        %1690 = vmatpush1.bf16.msra.mxu0 %v1679
        %1691 = vmatprep.subr.bf16.mxu0 0
        %1692 = vmatpush1.bf16.msra.mxu0 %v1680
        %1693 = vmatprep.subr.bf16.mxu0 0
        %1694 = vmatpush1.bf16.msra.mxu0 0
        %1695 = vmatprep.subr.bf16.mxu0 0
        %1696 = vmatpush1.bf16.msra.mxu0 0
        %1697 = vmatprep.subr.bf16.mxu0 0
        %1698 = vmatpush1.bf16.msra.mxu0 0
        %1699 = vmatprep.subr.bf16.mxu0 0
        %1700 = vmatpush1.bf16.msra.mxu0 0
        %1701 = vmatprep.subr.bf16.mxu0 0
        %1702 = vmatpush1.bf16.msra.mxu0 0
        %1703 = vmatprep.subr.bf16.mxu0 0
        %1704 = vmatpush1.bf16.msra.mxu0 0
        %1705 = vmatprep.subr.bf16.mxu0 0
        %1706 = vmatpush1.bf16.msra.mxu0 0
        %1707 = vmatprep.subr.bf16.mxu0 0
        %1708 = vmatpush1.bf16.msra.mxu0 0
        %1709 = vmatprep.subr.bf16.mxu0 0
        %1710 = vmatpush1.bf16.msra.mxu0 0
        %1711 = vmatprep.subr.bf16.mxu0 0
        %1712 = vmatpush1.bf16.msra.mxu0 0
        %1713 = vmatprep.subr.bf16.mxu0 0
        %1714 = vmatpush1.bf16.msra.mxu0 0
        %1715 = vmatprep.subr.bf16.mxu0 0
        %1716 = vmatpush1.bf16.msra.mxu0 0
        %1717 = vmatprep.subr.bf16.mxu0 0
        %1718 = vmatpush1.bf16.msra.mxu0 0
        %1719 = vmatprep.mubr.bf16.mxu0 0
        %1720 = vmatmul.mubr.bf16.gmra.mrb[0].mxu0 %v1685
        %v1721 = vpop.f32.mrb[0].mxu0
        %v1722 = vadd.f32 0.0, %v1721
        %v1723 = vpop.f32.mrb[0].mxu0
        %v1724 = vpop.f32.mrb[0].mxu0
        %v1725 = vadd.f32 0.0, %v1724
        %v1726 = vpop.f32.mrb[0].mxu0
        %1727 = vdwg.mxu0
        %v1728 = vadd.f32 %v1644, %v1722
        %v1729 = vadd.f32 %v1645, %v1725
        %s1730 = scalar_lea.vmem [#allocation19], 32
        %v1731 = vld [vmem:[%s1730] sm:$0xf]
        %v1732 = vld [vmem:[%s1730 + $0x4] sm:$0xf]
        %v1735 = vunpack.c.l.b16 %v1731
        %v1736 = vunpack.c.l.b16 %v1732
        %v1737 = vpack.c.b16 %v1736, %v1735
        %1738 = vrot.lane.b32.xlu0 %v1565, 126
        %v1739 = vpop.permute.xlu0 %1738
        %1740 = vrot.lane.b32.xlu0 %v1566, 126
        %v1741 = vpop.permute.xlu0 %1740
        %1742 = vrot.lane.b32.xlu0 %v1567, 126
        %v1743 = vpop.permute.xlu0 %1742
        %1744 = vrot.lane.b32.xlu0 %v1568, 126
        %v1745 = vpop.permute.xlu0 %1744
        %1746 = vrot.lane.b32.xlu0 %v1569, 126
        %v1747 = vpop.permute.xlu0 %1746
        %1748 = vrot.lane.b32.xlu0 %v1570, 126
        %v1749 = vpop.permute.xlu0 %1748
        %v1750 = vsel %vm685, %v1739, %v1741
        %v1751 = vsel %vm685, %v1743, %v1745
        %v1752 = vsel %vm685, %v1747, %v1749
        %v1757 = vsel %vm1100, %v1737, 0
        %1759 = vmatprep.subr.bf16.mxu0 0
        %1760 = vmatpush1.bf16.msra.mxu0 %v1750
        %1761 = vmatprep.subr.bf16.mxu0 0
        %1762 = vmatpush1.bf16.msra.mxu0 %v1751
        %1763 = vmatprep.subr.bf16.mxu0 0
        %1764 = vmatpush1.bf16.msra.mxu0 %v1752
        %1765 = vmatprep.subr.bf16.mxu0 0
        %1766 = vmatpush1.bf16.msra.mxu0 0
        %1767 = vmatprep.subr.bf16.mxu0 0
        %1768 = vmatpush1.bf16.msra.mxu0 0
        %1769 = vmatprep.subr.bf16.mxu0 0
        %1770 = vmatpush1.bf16.msra.mxu0 0
        %1771 = vmatprep.subr.bf16.mxu0 0
        %1772 = vmatpush1.bf16.msra.mxu0 0
        %1773 = vmatprep.subr.bf16.mxu0 0
        %1774 = vmatpush1.bf16.msra.mxu0 0
        %1775 = vmatprep.subr.bf16.mxu0 0
        %1776 = vmatpush1.bf16.msra.mxu0 0
        %1777 = vmatprep.subr.bf16.mxu0 0
        %1778 = vmatpush1.bf16.msra.mxu0 0
        %1779 = vmatprep.subr.bf16.mxu0 0
        %1780 = vmatpush1.bf16.msra.mxu0 0
        %1781 = vmatprep.subr.bf16.mxu0 0
        %1782 = vmatpush1.bf16.msra.mxu0 0
        %1783 = vmatprep.subr.bf16.mxu0 0
        %1784 = vmatpush1.bf16.msra.mxu0 0
        %1785 = vmatprep.subr.bf16.mxu0 0
        %1786 = vmatpush1.bf16.msra.mxu0 0
        %1787 = vmatprep.subr.bf16.mxu0 0
        %1788 = vmatpush1.bf16.msra.mxu0 0
        %1789 = vmatprep.subr.bf16.mxu0 0
        %1790 = vmatpush1.bf16.msra.mxu0 0
        %1791 = vmatprep.mubr.bf16.mxu0 0
        %1792 = vmatmul.mubr.bf16.gmra.mrb[0].mxu0 %v1757
        %v1793 = vpop.f32.mrb[0].mxu0
        %v1794 = vadd.f32 0.0, %v1793
        %v1795 = vpop.f32.mrb[0].mxu0
        %v1796 = vpop.f32.mrb[0].mxu0
        %v1797 = vadd.f32 0.0, %v1796
        %v1798 = vpop.f32.mrb[0].mxu0
        %1799 = vdwg.mxu0
        %v1800 = vadd.f32 %v1728, %v1794
        %v1801 = vadd.f32 %v1729, %v1797
        %v1802 = vld [vmem:[#allocation20] sm:$0xff]
        %v1803 = vld [vmem:[#allocation20 + $0x8] sm:$0xff]
        %1805 = vset.pattern.permute.xlu0 0
        %1806 = vperm.xlu0 %1805, %v1802
        %v1807 = vpop.permute.xlu0 %1806
        %1810 = vset.pattern.permute.xlu0 0
        %1811 = vperm.xlu0 %1810, %v1803
        %v1812 = vpop.permute.xlu0 %1811
        %v1814 = vadd.f32 %v1800, %v1807
        %v1815 = vadd.f32 %v1801, %v1812
        %vm1816 = vcmp.ge.f32.partialorder %v1814, 0.0
        %vm1817 = vcmp.ge.f32.partialorder %v1815, 0.0
        %v1818 = vmul.f32 %v1814, 0.01
        %v1819 = vmul.f32 %v1815, 0.01
        %v1820 = vsel %vm1816, %v1814, %v1818
        %v1821 = vsel %vm1817, %v1815, %v1819
        %v1822 = vld [vmem:[#allocation22] sm:$0xf]
        %v1823 = vld [vmem:[#allocation22 + $0x4] sm:$0xf]
        %v1824 = vld [vmem:[#allocation23] sm:$0xff]
        %v1825 = vld [vmem:[#allocation23 + $0x8] sm:$0xff]
        %1827 = vset.pattern.permute.xlu0 0
        %1828 = vperm.xlu0 %1827, %v1824
        %v1829 = vpop.permute.xlu0 %1828
        %1832 = vset.pattern.permute.xlu0 0
        %1833 = vperm.xlu0 %1832, %v1825
        %v1834 = vpop.permute.xlu0 %1833
        %v1838 = vunpack.c.l.b16 %v1822
        %v1839 = vunpack.c.l.b16 %v1823
        %v1840 = vpack.c.b16 %v1839, %v1838
        %v1843 = vsel %vm1200, %v1840, 0
        %1845 = vmatprep.subr.bf16.mxu0 0
        %1846 = vmatpush1.bf16.msra.mxu0 %v646
        %1847 = vmatprep.subr.bf16.mxu0 0
        %1848 = vmatpush1.bf16.msra.mxu0 0
        %1849 = vmatprep.subr.bf16.mxu0 0
        %1850 = vmatpush1.bf16.msra.mxu0 0
        %1851 = vmatprep.subr.bf16.mxu0 0
        %1852 = vmatpush1.bf16.msra.mxu0 0
        %1853 = vmatprep.subr.bf16.mxu0 0
        %1854 = vmatpush1.bf16.msra.mxu0 0
        %1855 = vmatprep.subr.bf16.mxu0 0
        %1856 = vmatpush1.bf16.msra.mxu0 0
        %1857 = vmatprep.subr.bf16.mxu0 0
        %1858 = vmatpush1.bf16.msra.mxu0 0
        %1859 = vmatprep.subr.bf16.mxu0 0
        %1860 = vmatpush1.bf16.msra.mxu0 0
        %1861 = vmatprep.subr.bf16.mxu0 0
        %1862 = vmatpush1.bf16.msra.mxu0 0
        %1863 = vmatprep.subr.bf16.mxu0 0
        %1864 = vmatpush1.bf16.msra.mxu0 0
        %1865 = vmatprep.subr.bf16.mxu0 0
        %1866 = vmatpush1.bf16.msra.mxu0 0
        %1867 = vmatprep.subr.bf16.mxu0 0
        %1868 = vmatpush1.bf16.msra.mxu0 0
        %1869 = vmatprep.subr.bf16.mxu0 0
        %1870 = vmatpush1.bf16.msra.mxu0 0
        %1871 = vmatprep.subr.bf16.mxu0 0
        %1872 = vmatpush1.bf16.msra.mxu0 0
        %1873 = vmatprep.subr.bf16.mxu0 0
        %1874 = vmatpush1.bf16.msra.mxu0 0
        %1875 = vmatprep.subr.bf16.mxu0 0
        %1876 = vmatpush1.bf16.msra.mxu0 0
        %1877 = vmatprep.mubr.bf16.mxu0 0
        %1878 = vmatmul.mubr.bf16.gmra.mrb[0].mxu0 %v1843
        %v1879 = vpop.f32.mrb[0].mxu0
        %v1880 = vadd.f32 %v1829, %v1879
        %v1881 = vpop.f32.mrb[0].mxu0
        %v1882 = vpop.f32.mrb[0].mxu0
        %v1883 = vadd.f32 %v1834, %v1882
        %v1884 = vpop.f32.mrb[0].mxu0
        %1885 = vdwg.mxu0
        %v1886 = vmax.f32 %v1880, 0.0
        %v1887 = vmax.f32 %v1883, 0.0
        %v1888 = vadd.f32 %v1820, %v1886
        %v1889 = vadd.f32 %v1821, %v1887
        %1890 = vst [vmem:[%s616] sm:$0xff] %v1888
        %1891 = vst [vmem:[%s616 + $0x8] sm:$0xff] %v1889
        %s1892 = sand.u32 %s307, 1
        %s1893 = scalar_lea.sflag [#allocation7], %s1892
        %s1894 = sand.u32 %s307, 1
        %s1895 = smul.addr %s1894, 16
        %s1896 = scalar_lea.vmem [#allocation25], %s1895
        // Predicated region
        $region117: #{tpu_custom_call.1} parent=67 // pred_check
          %p1897 = pneg %p317
        $region118: #{tpu_custom_call.1} parent=67 // pred_check_branch
          %1899 = sbr.rel (%p1897) target = $region120
        $region119: #{tpu_custom_call.1} parent=67 // pred_region
          %s1901 = ssub.s32 256, 256
          %1902 = vsyncadd %s1893, %s1901
          %s1903 = smul.addr %s37, 2
          %s1904 = smul.addr %s1903, 128
          %s1905 = scalar_lea.hbm %s12, %s1904
          %s1906 = sshll.u32 %s1896, 4
          %s1907 = int_to_ptr.vmem [resolvable:$true] %s1906
          %1912 = dma.vmem_to_hbm [thread:$0]  %s1907, 256, %s1905, %s1893, 128, 128, 8
        $region120: #{tpu_custom_call.1} parent=67 // pred_fallthru
          _
      $region68: #{tpu_custom_call.1} parent=5 // pred_fallthru
        _
      %p1913 = scmp.le.s32.totalorder 2, %s32
      // Predicated region
      $region121: #{tpu_custom_call.1} parent=5 // pred_check
        %p1914 = pneg %p1913
      $region122: #{tpu_custom_call.1} parent=5 // pred_check_branch
        %1916 = sbr.rel (%p1914) target = $region124
      $region123: #{tpu_custom_call.1} parent=5 // pred_region
        %s1917 = ssub.s32 %s32, 2
        // Predicated region
        $region125: #{tpu_custom_call.1} parent=123 // pred_check
          %p1918 = pneg %p323
        $region126: #{tpu_custom_call.1} parent=123 // pred_check_branch
          %1920 = sbr.rel (%p1918) target = $region128
        $region127: #{tpu_custom_call.1} parent=123 // pred_region
          %s1921 = sand.u32 %s308, 1
          %s1922 = scalar_lea.sflag [#allocation7], %s1921
          %s1923 = sand.u32 %s308, 1
          %s1924 = smul.addr %s1923, 16
          %s1925 = scalar_lea.vmem [#allocation25], %s1924
          %1926 = dma.done %s1922, 256
        $region128: #{tpu_custom_call.1} parent=123 // pred_fallthru
          _
      $region124: #{tpu_custom_call.1} parent=5 // pred_fallthru
        _
    $region6: #{tpu_custom_call.1} parent=1 // loop_footer
      %s36 = sadd.s32 1, %s32
    $region7: #{tpu_custom_call.1} parent=1 // loop_footer_branch
      %31 = sbr.rel target = $region3
    $region8: #{tpu_custom_call.1} parent=1 // loop_exit
      _
    %1927 = vsyncpa [#allocation6], 1
    %s1928 = scalar_lea.sflag [#allocation6], 1
    %1929 = vsyncpa %s1928, 1
    %1930 = vsyncpa [#allocation9], 1
    %s1931 = scalar_lea.sflag [#allocation9], 1
    %1932 = vsyncpa %s1931, 1
    %1933 = vsyncpa [#allocation12], 1
    %1934 = vsyncpa [#allocation15], 1
    %1935 = vsyncpa [#allocation18], 1
    %1936 = vsyncpa [#allocation21], 1
    %1937 = vsyncpa [#allocation24], 1
    %1938 = vsyncpa [#allocation7], 1
    %s1939 = scalar_lea.sflag [#allocation7], 1
    %1940 = vsyncpa %s1939, 1

</llo_original>
